<compile_context>
chip_gen: v7x
topology: tpu7x:2x2x1
jax: 0.10.0
libtpu: 0.0.40
codegen_flags: <defaults>
</compile_context>

<pallas_src>
import functools

import jax
import jax.numpy as jnp
from jax import lax
from jax.experimental import pallas as pl
from jax.experimental.pallas import tpu as pltpu

_LN_EPS = 1e-5


def _gelu_tanh(x):
    # TODO(synk): torch.nn.GELU() defaults to the exact erf form; the tanh approximation
    # (max |delta| ~3e-3) is used for guaranteed Mosaic lowering.  The reference below
    # uses the same form so the comparison is apples-to-apples.
    c = 0.7978845608028654  # sqrt(2/pi)
    return 0.5 * x * (1.0 + jnp.tanh(c * (x + 0.044715 * x * x * x)))


def _ln_normalize(x):
    """LayerNorm WITHOUT gamma/beta (those are folded into the following matmul)."""
    mu = jnp.mean(x, axis=-1, keepdims=True)
    xc = x - mu
    var = jnp.mean(xc * xc, axis=-1, keepdims=True)
    return xc * lax.rsqrt(var + _LN_EPS)


def _layer_norm(x, gamma, beta):
    return _ln_normalize(x) * gamma + beta


# ---------------------------------------------------------------------------
# Fused per-layer kernel (spatial attention + temporal block + FFN)
# ---------------------------------------------------------------------------

def _fused_layer_kernel(x_ref, wqkv_ref, bqkv_ref, wout_ref, bout_ref,
                        wtmp_ref, btmp_ref, w1_ref, b1_ref, w2_ref, b2_ref,
                        o_ref, *, heads, dim_head):
    """One grid step = (batch block i, layer l).

    The output BlockSpec index depends only on i, so the activation slab stays resident
    in VMEM across the whole layer axis; x is read once (l == 0) and the final value is
    written back once per batch block.  Layer-l folded weights are streamed
    (double-buffered) along the "arbitrary" layer axis.
    """
    layer = pl.program_id(1)

    @pl.when(layer == 0)
    def _():                                    # seed the resident activation slab
        o_ref[...] = x_ref[...]

    bb, n, d = o_ref.shape
    rows = bb * n
    inner = heads * dim_head
    mxu = wqkv_ref.dtype                        # bf16 weights -> bf16 MXU operands

    h = o_ref[...].astype(jnp.float32).reshape(rows, d)   # residual stream, f32

    # --- 1) spatial FSAttention: h += Attn(LN1(h)) ------------------------------------
    xn = _ln_normalize(h).astype(mxu)           # LN1 gamma/beta folded into wqkv/bqkv
    qkv = jnp.dot(xn, wqkv_ref[...], preferred_element_type=jnp.float32) + bqkv_ref[...]
    q = qkv[:, 0 * inner:1 * inner].reshape(bb, n, inner).astype(mxu)  # scale pre-folded
    k = qkv[:, 1 * inner:2 * inner].reshape(bb, n, inner).astype(mxu)
    v = qkv[:, 2 * inner:3 * inner].reshape(bb, n, inner).astype(mxu)

    # TODO(synk): once Mosaic supports multi-batch-dim dot_general, replace this unrolled
    # per-head loop with a single einsum('bihd,bjhd->bhij') over all heads, and tile the
    # KV dimension flash-style for large N.
    per_head_out = []
    for hd in range(heads):
        sl = slice(hd * dim_head, (hd + 1) * dim_head)
        qh, kh, vh = q[:, :, sl], k[:, :, sl], v[:, :, sl]             # (bb, n, dh)
        s = jnp.einsum('bid,bjd->bij', qh, kh,
                       preferred_element_type=jnp.float32)             # (bb, n, n) f32
        s = s - jnp.max(s, axis=-1, keepdims=True)
        e = jnp.exp(s)
        den = jnp.sum(e, axis=-1, keepdims=True)
        r = pl.reciprocal(den, approx=True)
        r = r * (2.0 - den * r)                 # one Newton step -> ~f32-exact (EUP+VPU)
        p = (e * r).astype(mxu)
        per_head_out.append(
            jnp.einsum('bij,bjd->bid', p, vh,
                       preferred_element_type=jnp.float32).reshape(rows, dim_head))
    # single K=inner matmul for the output projection (fills the MXU contraction depth)
    o_all = jnp.concatenate(per_head_out, axis=-1).astype(mxu)          # (rows, inner)
    h = h + jnp.dot(o_all, wout_ref[...],
                    preferred_element_type=jnp.float32) + bout_ref[...]

    # --- 2) temporal FSAttention on length-1 sequences --------------------------------
    # Exact because the torch forward reshapes to (B*N, 1, D): softmax over one key == 1,
    # so the block is LN2 -> W_v -> W_out (+bias) + residual; W_v @ W_out and the LN2
    # affine are folded wrapper-side into one (D, D) matrix.  Guard: valid only while the
    # temporal sequence length is 1 (it is, by construction of this module's forward).
    xn = _ln_normalize(h).astype(mxu)
    h = h + jnp.dot(xn, wtmp_ref[...],
                    preferred_element_type=jnp.float32) + btmp_ref[...]

    # --- 3) feed-forward: h += W2(GELU(W1(LN3(h)))) ------------------------------------
    xn = _ln_normalize(h).astype(mxu)
    hid = jnp.dot(xn, w1_ref[...], preferred_element_type=jnp.float32) + b1_ref[...]
    hid = _gelu_tanh(hid).astype(mxu)
    h = h + jnp.dot(hid, w2_ref[...],
                    preferred_element_type=jnp.float32) + b2_ref[...]

    o_ref[...] = h.reshape(bb, n, d).astype(o_ref.dtype)


# ---------------------------------------------------------------------------
# Wrapper: constant folds, BlockSpecs, pallas_call
# ---------------------------------------------------------------------------

def _pick_batch_block(batch, seq, target_rows=512):
    """Largest divisor of `batch` giving ~target_rows rows per grid step, while keeping
    at least 2 grid steps over batch (when batch >= 2) so the 'parallel' axis can shard
    across v7x's two TensorCores."""
    bb = max(1, min(batch, max(1, target_rows // max(seq, 1))))
    while batch % bb:
        bb -= 1
    if batch >= 2 and bb == batch:
        bb = batch // 2
        while batch % bb:
            bb -= 1
    return bb


def _fold_and_stack_params(params, *, heads, dim_head, mxu_dtype):
    """Per layer, constant-fold (a) LN gamma/beta into the following weight/bias,
    (b) the softmax scale into the Q columns of W_qkv, (c) the temporal block's
    W_v @ W_out product; stack over depth and cast weight matrices to the MXU dtype."""
    inner = heads * dim_head
    scale = dim_head ** -0.5
    qscale = jnp.concatenate([jnp.full((inner,), scale, jnp.float32),
                              jnp.ones((2 * inner,), jnp.float32)])

    def cast(w):
        return w.astype(mxu_dtype) if mxu_dtype is not None else w

    acc = {k: [] for k in ('wqkv', 'bqkv', 'wout', 'bout', 'wtmp', 'btmp',
                           'w1', 'b1', 'w2', 'b2')}
    for p in params:
        acc['wqkv'].append((p['ln1_g'][:, None] * p['wqkv_sp']) * qscale[None, :])
        acc['bqkv'].append((p['ln1_b'] @ p['wqkv_sp']) * qscale)
        acc['wout'].append(p['wout_sp'])
        acc['bout'].append(p['bout_sp'])

        w_comb = p['wqkv_t'][:, 2 * inner:3 * inner] @ p['wout_t']      # (D, D)
        acc['wtmp'].append(p['ln2_g'][:, None] * w_comb)
        acc['btmp'].append(p['ln2_b'] @ w_comb + p['bout_t'])

        acc['w1'].append(p['ln3_g'][:, None] * p['w1'])
        acc['b1'].append(p['ln3_b'] @ p['w1'] + p['b1'])
        acc['w2'].append(p['w2'])
        acc['b2'].append(p['b2'])

    out = {}
    for name in ('wqkv', 'wout', 'wtmp', 'w1', 'w2'):
        out[name] = cast(jnp.stack(acc[name], axis=0))
    for name in ('bqkv', 'bout', 'btmp', 'b1', 'b2'):
        out[name] = jnp.stack(acc[name], axis=0)[:, None, :].astype(jnp.float32)
    return out


def _vmem_limit_bytes(bb, n, d, inner, hidden, act_itemsize, w_itemsize):
    rows = bb * n
    act = 4 * bb * n * d * act_itemsize                                   # x (2 bufs) + out
    wts = 2 * w_itemsize * (3 * d * inner + inner * d + d * d + d * hidden + hidden * d)
    bias = 2 * 4 * (3 * inner + hidden + 3 * d)
    tmp = 4 * (4 * rows * inner + 2 * bb * n * n + rows * hidden + 2 * rows * d)
    est = act + wts + bias + tmp
    return int(min(max(2 * est, 16 * 2 ** 20), 64 * 2 ** 20))   # cap at v7x physical VMEM


def fsa_transformer_encoder(x, params, *, heads, dim_head,
                            mxu_dtype=jnp.bfloat16, target_rows=512):
    """Pallas forward of FSATransformerEncoder.  x: (B, N, 1, D) -> (B, N, D).

    One fused pallas_call covers all layers: grid = (batch blocks, depth).  LN / softmax /
    GELU / residual math runs in f32, MXU operands in `mxu_dtype` (bf16 by default; pass
    None to keep f32 operands), accumulation in f32.
    """
    B, N, one, D = x.shape
    assert one == 1, "the module's forward squeezes dim 2"
    depth = len(params)
    inner = heads * dim_head
    hidden = params[0]['w1'].shape[1]

    h = x.reshape(B, N, D)                             # x.squeeze(2)
    w = _fold_and_stack_params(params, heads=heads, dim_head=dim_head, mxu_dtype=mxu_dtype)

    bb = _pick_batch_block(B, N, target_rows)
    act_idx = lambda i, l: (i, 0, 0)                   # same block across the layer axis
    wt_idx = lambda i, l: (l, 0, 0)                    # stream layer l's weights

    kernel = functools.partial(_fused_layer_kernel, heads=heads, dim_head=dim_head)
    w_item = (jnp.dtype(mxu_dtype).itemsize if mxu_dtype is not None
              else jnp.dtype(x.dtype).itemsize)

    return pl.pallas_call(
        kernel,
        out_shape=jax.ShapeDtypeStruct((B, N, D), x.dtype),
        grid=(B // bb, depth),
        in_specs=[
            pl.BlockSpec((bb, N, D), act_idx),
            pl.BlockSpec((None, D, 3 * inner), wt_idx),
            pl.BlockSpec((None, 1, 3 * inner), wt_idx),
            pl.BlockSpec((None, inner, D), wt_idx),
            pl.BlockSpec((None, 1, D), wt_idx),
            pl.BlockSpec((None, D, D), wt_idx),
            pl.BlockSpec((None, 1, D), wt_idx),
            pl.BlockSpec((None, D, hidden), wt_idx),
            pl.BlockSpec((None, 1, hidden), wt_idx),
            pl.BlockSpec((None, hidden, D), wt_idx),
            pl.BlockSpec((None, 1, D), wt_idx),
        ],
        out_specs=pl.BlockSpec((bb, N, D), act_idx),
        compiler_params=pltpu.CompilerParams(
            dimension_semantics=("parallel", "arbitrary"),
            vmem_limit_bytes=_vmem_limit_bytes(
                bb, N, D, inner, hidden, jnp.dtype(x.dtype).itemsize, w_item),
        ),
    )(h, w['wqkv'], w['bqkv'], w['wout'], w['bout'], w['wtmp'], w['btmp'],
      w['w1'], w['b1'], w['w2'], w['b2'])
    # the trailing chunk/cat/flatten of the torch forward is an identity reshape


# ---------------------------------------------------------------------------
# Pure-JAX reference: literal port of the PyTorch forward (incl. the reshape dance)
# ---------------------------------------------------------------------------

def _fs_attention_ref(x, w_qkv, w_out, b_out, *, heads, dim_head):
    b, n, _ = x.shape
    inner = heads * dim_head
    scale = dim_head ** -0.5
    qkv = jnp.einsum('bnd,de->bne', x, w_qkv)
    q, k, v = jnp.split(qkv, 3, axis=-1)

    def split_heads(t):
        return t.reshape(b, n, heads, dim_head).transpose(0, 2, 1, 3)

    q, k, v = map(split_heads, (q, k, v))
    dots = jnp.einsum('bhid,bhjd->bhij', q, k) * scale
    attn = jax.nn.softmax(dots, axis=-1)
    out = jnp.einsum('bhij,bhjd->bhid', attn, v)
    out = out.transpose(0, 2, 1, 3).reshape(b, n, inner)
    return jnp.einsum('bne,ed->bnd', out, w_out) + b_out


def _ffn_ref(x, w1, b1, w2, b2):
    h = _gelu_tanh(jnp.einsum('...d,dh->...h', x, w1) + b1)
    return jnp.einsum('...h,hd->...d', h, w2) + b2


def _regroup_ref(t, b):
    # torch: chunk(b, 0) -> [c[None]] -> cat(0) -> transpose(1, 2) -> flatten(0, 1)
    t = jnp.stack(jnp.split(t, b, axis=0), axis=0)
    t = jnp.swapaxes(t, 1, 2)
    return t.reshape((t.shape[0] * t.shape[1],) + t.shape[2:])


def fsa_transformer_encoder_ref(x, params, *, heads, dim_head):
    x = jnp.squeeze(x, axis=2)
    b = x.shape[0]
    for p in params:
        sp = _fs_attention_ref(_layer_norm(x, p['ln1_g'], p['ln1_b']),
                               p['wqkv_sp'], p['wout_sp'], p['bout_sp'],
                               heads=heads, dim_head=dim_head) + x
        sp = _regroup_ref(sp, b)                                     # (b*n, 1, d)
        tp = _fs_attention_ref(_layer_norm(sp, p['ln2_g'], p['ln2_b']),
                               p['wqkv_t'], p['wout_t'], p['bout_t'],
                               heads=heads, dim_head=dim_head) + sp
        x = _ffn_ref(_layer_norm(tp, p['ln3_g'], p['ln3_b']),
                     p['w1'], p['b1'], p['w2'], p['b2']) + tp
        x = _regroup_ref(x, b)                                       # back to (b, n, d)
    t = jnp.stack(jnp.split(x, b, axis=0), axis=0)                   # final chunk/cat
    return t.reshape(t.shape[0], t.shape[1] * t.shape[2], t.shape[3])  # flatten(1, 2)


# ---------------------------------------------------------------------------
# Parameter init + demo
# ---------------------------------------------------------------------------

def init_params(key, depth, dim, heads, dim_head, mlp_dim):
    inner = heads * dim_head
    layers = []
    for lkey in jax.random.split(key, depth):
        ks = jax.random.split(lkey, 16)
        n = jax.random.normal
        layers.append(dict(
            ln1_g=1.0 + 0.1 * n(ks[0], (dim,), jnp.float32),
            ln1_b=0.1 * n(ks[1], (dim,), jnp.float32),
            # 0.5 factor keeps attention logits O(1) so the bf16-vs-f32 comparison stays tight
            wqkv_sp=n(ks[2], (dim, 3 * inner), jnp.float32) * dim ** -0.5 * 0.5,
            wout_sp=n(ks[3], (inner, dim), jnp.float32) * inner ** -0.5,
            bout_sp=0.02 * n(ks[4], (dim,), jnp.float32),
            ln2_g=1.0 + 0.1 * n(ks[5], (dim,), jnp.float32),
            ln2_b=0.1 * n(ks[6], (dim,), jnp.float32),
            wqkv_t=n(ks[7], (dim, 3 * inner), jnp.float32) * dim ** -0.5,
            wout_t=n(ks[8], (inner, dim), jnp.float32) * inner ** -0.5,
            bout_t=0.02 * n(ks[9], (dim,), jnp.float32),
            ln3_g=1.0 + 0.1 * n(ks[10], (dim,), jnp.float32),
            ln3_b=0.1 * n(ks[11], (dim,), jnp.float32),
            w1=n(ks[12], (dim, mlp_dim), jnp.float32) * dim ** -0.5,
            b1=0.02 * n(ks[13], (mlp_dim,), jnp.float32),
            w2=n(ks[14], (mlp_dim, dim), jnp.float32) * mlp_dim ** -0.5,
            b2=0.02 * n(ks[15], (dim,), jnp.float32),
        ))
    return layers


if __name__ == "__main__":
    # Small, module-consistent shapes.  D=128 keeps every kernel output lane-dense.
    B, N, DIM = 2, 8, 128          # batch, tokens per "frame", channels
    HEADS, DIM_HEAD = 4, 32        # inner_dim = 128
    MLP_DIM = 256
    DEPTH = 2
    NT, NH, NW = 2, 2, 4           # stored by the torch module but unused in its forward

    key = jax.random.PRNGKey(0)
    kx, kp = jax.random.split(key)
    x = jax.random.normal(kx, (B, N, 1, DIM), dtype=jnp.float32)   # forward does squeeze(2)
    params = init_params(kp, DEPTH, DIM, HEADS, DIM_HEAD, MLP_DIM)

    fwd = jax.jit(functools.partial(fsa_transformer_encoder, heads=HEADS, dim_head=DIM_HEAD))
    y = jax.block_until_ready(fwd(x, params))

    y_ref = fsa_transformer_encoder_ref(x, params, heads=HEADS, dim_head=DIM_HEAD)
    assert y.shape == (B, N, DIM), y.shape
    # tolerance reflects bf16 MXU operands (f32 accumulation) vs the f32 reference
    assert jnp.allclose(y, y_ref, atol=5e-2, rtol=5e-2), "mismatch vs reference"

    print("KERNEL_OK")
</pallas_src>

<mosaic_0001>
module attributes {stable_mosaic.version = 11 : i64} {
  func.func @_fused_layer_kernel(%arg0: i32, %arg1: i32, %arg2: memref<1x8x128xf32, #tpu.memory_space<vmem>>, %arg3: memref<1x128x384xbf16, #tpu.memory_space<vmem>>, %arg4: memref<1x1x384xf32, #tpu.memory_space<vmem>>, %arg5: memref<1x128x128xbf16, #tpu.memory_space<vmem>>, %arg6: memref<1x1x128xf32, #tpu.memory_space<vmem>>, %arg7: memref<1x128x128xbf16, #tpu.memory_space<vmem>>, %arg8: memref<1x1x128xf32, #tpu.memory_space<vmem>>, %arg9: memref<1x128x256xbf16, #tpu.memory_space<vmem>>, %arg10: memref<1x1x256xf32, #tpu.memory_space<vmem>>, %arg11: memref<1x256x128xbf16, #tpu.memory_space<vmem>>, %arg12: memref<1x1x128xf32, #tpu.memory_space<vmem>>, %arg13: memref<1x8x128xf32, #tpu.memory_space<vmem>>) attributes {dimension_semantics = [#tpu.dimension_semantics<parallel>, #tpu.dimension_semantics<arbitrary>], iteration_bounds = array<i64: 2, 2>, scalar_prefetch = 0 : i64, scratch_operands = 0 : i64, tpu.core_type = #tpu.core_type<tc>, window_params = [{transform_indices = @transform_0, window_bounds = array<i64: 1, 8, 128>}, {transform_indices = @transform_1, window_bounds = array<i64: 1, 128, 384>}, {transform_indices = @transform_2, window_bounds = array<i64: 1, 1, 384>}, {transform_indices = @transform_3, window_bounds = array<i64: 1, 128, 128>}, {transform_indices = @transform_4, window_bounds = array<i64: 1, 1, 128>}, {transform_indices = @transform_5, window_bounds = array<i64: 1, 128, 128>}, {transform_indices = @transform_6, window_bounds = array<i64: 1, 1, 128>}, {transform_indices = @transform_7, window_bounds = array<i64: 1, 128, 256>}, {transform_indices = @transform_8, window_bounds = array<i64: 1, 1, 256>}, {transform_indices = @transform_9, window_bounds = array<i64: 1, 256, 128>}, {transform_indices = @transform_10, window_bounds = array<i64: 1, 1, 128>}, {transform_indices = @transform_11, window_bounds = array<i64: 1, 8, 128>}]} {
    %c0_i32 = arith.constant 0 : i32
    %0 = arith.cmpi eq, %arg1, %c0_i32 : i32
    %1 = arith.extui %0 : i1 to i32
    %c0_i32_0 = arith.constant 0 : i32
    %2 = arith.cmpi ne, %1, %c0_i32_0 : i32
    scf.if %2 {
      %c0_79 = arith.constant 0 : index
      %c0_80 = arith.constant 0 : index
      %c0_81 = arith.constant 0 : index
      %205 = vector.load %arg2[%c0_79, %c0_80, %c0_81] : memref<1x8x128xf32, #tpu.memory_space<vmem>>, vector<1x8x128xf32>
      %c0_82 = arith.constant 0 : index
      %c0_83 = arith.constant 0 : index
      %c0_84 = arith.constant 0 : index
      %206 = vector.load %arg13[%c0_82, %c0_83, %c0_84] : memref<1x8x128xf32, #tpu.memory_space<vmem>>, vector<1x8x128xf32>
      tpu.vector_store %arg13[%c0_82, %c0_83, %c0_84], %205 {strides = array<i32>} : memref<1x8x128xf32, #tpu.memory_space<vmem>>, vector<1x8x128xf32>,
    } else {
    }
    %c0 = arith.constant 0 : index
    %c0_1 = arith.constant 0 : index
    %c0_2 = arith.constant 0 : index
    %3 = vector.load %arg13[%c0, %c0_1, %c0_2] : memref<1x8x128xf32, #tpu.memory_space<vmem>>, vector<1x8x128xf32>
    %4 = vector.shape_cast %3 : vector<1x8x128xf32> to vector<8x128xf32>
    %cst = arith.constant dense<0.000000e+00> : vector<8xf32>
    %5 = vector.multi_reduction <add>, %4, %cst [1] : vector<8x128xf32> to vector<8xf32>
    %6 = vector.shape_cast %5 : vector<8xf32> to vector<8x1xf32>
    %cst_3 = arith.constant 1.280000e+02 : f32
    %7 = vector.broadcast %cst_3 : f32 to vector<8x1xf32>
    %8 = arith.divf %6, %7 : vector<8x1xf32>
    %9 = vector.broadcast %8 : vector<8x1xf32> to vector<8x128xf32>
    %10 = arith.subf %4, %9 : vector<8x128xf32>
    %11 = arith.mulf %10, %10 : vector<8x128xf32>
    %cst_4 = arith.constant dense<0.000000e+00> : vector<8xf32>
    %12 = vector.multi_reduction <add>, %11, %cst_4 [1] : vector<8x128xf32> to vector<8xf32>
    %13 = vector.shape_cast %12 : vector<8xf32> to vector<8x1xf32>
    %cst_5 = arith.constant 1.280000e+02 : f32
    %14 = vector.broadcast %cst_5 : f32 to vector<8x1xf32>
    %15 = arith.divf %13, %14 : vector<8x1xf32>
    %cst_6 = arith.constant 9.99999974E-6 : f32
    %16 = vector.broadcast %cst_6 : f32 to vector<8x1xf32>
    %17 = arith.addf %15, %16 : vector<8x1xf32>
    %18 = math.rsqrt %17 : vector<8x1xf32>
    %19 = vector.broadcast %18 : vector<8x1xf32> to vector<8x128xf32>
    %20 = arith.mulf %10, %19 : vector<8x128xf32>
    %21 = arith.truncf %20 : vector<8x128xf32> to vector<8x128xbf16>
    %c0_7 = arith.constant 0 : index
    %c0_8 = arith.constant 0 : index
    %c0_9 = arith.constant 0 : index
    %22 = vector.load %arg3[%c0_7, %c0_8, %c0_9] : memref<1x128x384xbf16, #tpu.memory_space<vmem>>, vector<1x128x384xbf16>
    %23 = vector.shape_cast %22 : vector<1x128x384xbf16> to vector<128x384xbf16>
    %cst_10 = arith.constant dense<0.000000e+00> : vector<8x384xf32>
    %24 = tpu.matmul %21, %23, %cst_10 {dimension_numbers = #tpu.dot_dimension_numbers<[1], [0], [0], [1], [0, 0, 1, 1], [], []>} : vector<8x128xbf16>, vector<128x384xbf16>, vector<8x384xf32> -> vector<8x384xf32>
    %c0_11 = arith.constant 0 : index
    %c0_12 = arith.constant 0 : index
    %c0_13 = arith.constant 0 : index
    %25 = vector.load %arg4[%c0_11, %c0_12, %c0_13] : memref<1x1x384xf32, #tpu.memory_space<vmem>>, vector<1x1x384xf32>
    %26 = vector.shape_cast %25 : vector<1x1x384xf32> to vector<1x384xf32>
    %27 = vector.broadcast %26 : vector<1x384xf32> to vector<8x384xf32>
    %28 = arith.addf %24, %27 : vector<8x384xf32>
    %29 = vector.extract_strided_slice %28 {offsets = [0, 0], sizes = [8, 128], strides = [1, 1]} : vector<8x384xf32> to vector<8x128xf32>
    %30 = vector.shape_cast %29 : vector<8x128xf32> to vector<1x8x128xf32>
    %31 = arith.truncf %30 : vector<1x8x128xf32> to vector<1x8x128xbf16>
    %32 = vector.extract_strided_slice %28 {offsets = [0, 128], sizes = [8, 128], strides = [1, 1]} : vector<8x384xf32> to vector<8x128xf32>
    %33 = vector.shape_cast %32 : vector<8x128xf32> to vector<1x8x128xf32>
    %34 = arith.truncf %33 : vector<1x8x128xf32> to vector<1x8x128xbf16>
    %35 = vector.extract_strided_slice %28 {offsets = [0, 256], sizes = [8, 128], strides = [1, 1]} : vector<8x384xf32> to vector<8x128xf32>
    %36 = vector.shape_cast %35 : vector<8x128xf32> to vector<1x8x128xf32>
    %37 = arith.truncf %36 : vector<1x8x128xf32> to vector<1x8x128xbf16>
    %38 = vector.extract_strided_slice %31 {offsets = [0, 0, 0], sizes = [1, 8, 32], strides = [1, 1, 1]} : vector<1x8x128xbf16> to vector<1x8x32xbf16>
    %39 = vector.extract_strided_slice %34 {offsets = [0, 0, 0], sizes = [1, 8, 32], strides = [1, 1, 1]} : vector<1x8x128xbf16> to vector<1x8x32xbf16>
    %40 = vector.extract_strided_slice %37 {offsets = [0, 0, 0], sizes = [1, 8, 32], strides = [1, 1, 1]} : vector<1x8x128xbf16> to vector<1x8x32xbf16>
    "tpu.trace_start"() <{level = 10 : i32, message = "bid,bjd->bij"}> : () -> ()
    %cst_14 = arith.constant dense<0.000000e+00> : vector<1x8x8xf32>
    %41 = tpu.matmul %38, %39, %cst_14 {dimension_numbers = #tpu.dot_dimension_numbers<[2], [2], [1], [1], [0, 0, 0, 1, 1, 1], [0], [0]>} : vector<1x8x32xbf16>, vector<1x8x32xbf16>, vector<1x8x8xf32> -> vector<1x8x8xf32>
    "tpu.trace_stop"() : () -> ()
    %cst_15 = arith.constant dense<0xFF800000> : vector<1x8xf32>
    %42 = vector.multi_reduction <maximumf>, %41, %cst_15 [2] : vector<1x8x8xf32> to vector<1x8xf32>
    %43 = vector.shape_cast %42 : vector<1x8xf32> to vector<1x8x1xf32>
    %44 = vector.broadcast %43 : vector<1x8x1xf32> to vector<1x8x8xf32>
    %45 = arith.subf %41, %44 : vector<1x8x8xf32>
    %46 = math.exp %45 : vector<1x8x8xf32>
    %cst_16 = arith.constant dense<0.000000e+00> : vector<1x8xf32>
    %47 = vector.multi_reduction <add>, %46, %cst_16 [2] : vector<1x8x8xf32> to vector<1x8xf32>
    %48 = vector.shape_cast %47 : vector<1x8xf32> to vector<1x8x1xf32>
    %49 = tpu.reciprocal %48 {approx = true} : vector<1x8x1xf32> -> vector<1x8x1xf32>
    %50 = arith.mulf %48, %49 : vector<1x8x1xf32>
    %cst_17 = arith.constant 2.000000e+00 : f32
    %51 = vector.broadcast %cst_17 : f32 to vector<1x8x1xf32>
    %52 = arith.subf %51, %50 : vector<1x8x1xf32>
    %53 = arith.mulf %49, %52 : vector<1x8x1xf32>
    %54 = vector.broadcast %53 : vector<1x8x1xf32> to vector<1x8x8xf32>
    %55 = arith.mulf %46, %54 : vector<1x8x8xf32>
    %56 = arith.truncf %55 : vector<1x8x8xf32> to vector<1x8x8xbf16>
    "tpu.trace_start"() <{level = 10 : i32, message = "bij,bjd->bid"}> : () -> ()
    %cst_18 = arith.constant dense<0.000000e+00> : vector<1x8x32xf32>
    %57 = tpu.matmul %56, %40, %cst_18 {dimension_numbers = #tpu.dot_dimension_numbers<[2], [1], [1], [2], [0, 0, 0, 1, 1, 2], [0], [0]>} : vector<1x8x8xbf16>, vector<1x8x32xbf16>, vector<1x8x32xf32> -> vector<1x8x32xf32>
    "tpu.trace_stop"() : () -> ()
    %58 = vector.shape_cast %57 : vector<1x8x32xf32> to vector<8x32xf32>
    %59 = vector.extract_strided_slice %31 {offsets = [0, 0, 32], sizes = [1, 8, 32], strides = [1, 1, 1]} : vector<1x8x128xbf16> to vector<1x8x32xbf16>
    %60 = vector.extract_strided_slice %34 {offsets = [0, 0, 32], sizes = [1, 8, 32], strides = [1, 1, 1]} : vector<1x8x128xbf16> to vector<1x8x32xbf16>
    %61 = vector.extract_strided_slice %37 {offsets = [0, 0, 32], sizes = [1, 8, 32], strides = [1, 1, 1]} : vector<1x8x128xbf16> to vector<1x8x32xbf16>
    "tpu.trace_start"() <{level = 10 : i32, message = "bid,bjd->bij"}> : () -> ()
    %cst_19 = arith.constant dense<0.000000e+00> : vector<1x8x8xf32>
    %62 = tpu.matmul %59, %60, %cst_19 {dimension_numbers = #tpu.dot_dimension_numbers<[2], [2], [1], [1], [0, 0, 0, 1, 1, 1], [0], [0]>} : vector<1x8x32xbf16>, vector<1x8x32xbf16>, vector<1x8x8xf32> -> vector<1x8x8xf32>
    "tpu.trace_stop"() : () -> ()
    %cst_20 = arith.constant dense<0xFF800000> : vector<1x8xf32>
    %63 = vector.multi_reduction <maximumf>, %62, %cst_20 [2] : vector<1x8x8xf32> to vector<1x8xf32>
    %64 = vector.shape_cast %63 : vector<1x8xf32> to vector<1x8x1xf32>
    %65 = vector.broadcast %64 : vector<1x8x1xf32> to vector<1x8x8xf32>
    %66 = arith.subf %62, %65 : vector<1x8x8xf32>
    %67 = math.exp %66 : vector<1x8x8xf32>
    %cst_21 = arith.constant dense<0.000000e+00> : vector<1x8xf32>
    %68 = vector.multi_reduction <add>, %67, %cst_21 [2] : vector<1x8x8xf32> to vector<1x8xf32>
    %69 = vector.shape_cast %68 : vector<1x8xf32> to vector<1x8x1xf32>
    %70 = tpu.reciprocal %69 {approx = true} : vector<1x8x1xf32> -> vector<1x8x1xf32>
    %71 = arith.mulf %69, %70 : vector<1x8x1xf32>
    %cst_22 = arith.constant 2.000000e+00 : f32
    %72 = vector.broadcast %cst_22 : f32 to vector<1x8x1xf32>
    %73 = arith.subf %72, %71 : vector<1x8x1xf32>
    %74 = arith.mulf %70, %73 : vector<1x8x1xf32>
    %75 = vector.broadcast %74 : vector<1x8x1xf32> to vector<1x8x8xf32>
    %76 = arith.mulf %67, %75 : vector<1x8x8xf32>
    %77 = arith.truncf %76 : vector<1x8x8xf32> to vector<1x8x8xbf16>
    "tpu.trace_start"() <{level = 10 : i32, message = "bij,bjd->bid"}> : () -> ()
    %cst_23 = arith.constant dense<0.000000e+00> : vector<1x8x32xf32>
    %78 = tpu.matmul %77, %61, %cst_23 {dimension_numbers = #tpu.dot_dimension_numbers<[2], [1], [1], [2], [0, 0, 0, 1, 1, 2], [0], [0]>} : vector<1x8x8xbf16>, vector<1x8x32xbf16>, vector<1x8x32xf32> -> vector<1x8x32xf32>
    "tpu.trace_stop"() : () -> ()
    %79 = vector.shape_cast %78 : vector<1x8x32xf32> to vector<8x32xf32>
    %80 = vector.extract_strided_slice %31 {offsets = [0, 0, 64], sizes = [1, 8, 32], strides = [1, 1, 1]} : vector<1x8x128xbf16> to vector<1x8x32xbf16>
    %81 = vector.extract_strided_slice %34 {offsets = [0, 0, 64], sizes = [1, 8, 32], strides = [1, 1, 1]} : vector<1x8x128xbf16> to vector<1x8x32xbf16>
    %82 = vector.extract_strided_slice %37 {offsets = [0, 0, 64], sizes = [1, 8, 32], strides = [1, 1, 1]} : vector<1x8x128xbf16> to vector<1x8x32xbf16>
    "tpu.trace_start"() <{level = 10 : i32, message = "bid,bjd->bij"}> : () -> ()
    %cst_24 = arith.constant dense<0.000000e+00> : vector<1x8x8xf32>
    %83 = tpu.matmul %80, %81, %cst_24 {dimension_numbers = #tpu.dot_dimension_numbers<[2], [2], [1], [1], [0, 0, 0, 1, 1, 1], [0], [0]>} : vector<1x8x32xbf16>, vector<1x8x32xbf16>, vector<1x8x8xf32> -> vector<1x8x8xf32>
    "tpu.trace_stop"() : () -> ()
    %cst_25 = arith.constant dense<0xFF800000> : vector<1x8xf32>
    %84 = vector.multi_reduction <maximumf>, %83, %cst_25 [2] : vector<1x8x8xf32> to vector<1x8xf32>
    %85 = vector.shape_cast %84 : vector<1x8xf32> to vector<1x8x1xf32>
    %86 = vector.broadcast %85 : vector<1x8x1xf32> to vector<1x8x8xf32>
    %87 = arith.subf %83, %86 : vector<1x8x8xf32>
    %88 = math.exp %87 : vector<1x8x8xf32>
    %cst_26 = arith.constant dense<0.000000e+00> : vector<1x8xf32>
    %89 = vector.multi_reduction <add>, %88, %cst_26 [2] : vector<1x8x8xf32> to vector<1x8xf32>
    %90 = vector.shape_cast %89 : vector<1x8xf32> to vector<1x8x1xf32>
    %91 = tpu.reciprocal %90 {approx = true} : vector<1x8x1xf32> -> vector<1x8x1xf32>
    %92 = arith.mulf %90, %91 : vector<1x8x1xf32>
    %cst_27 = arith.constant 2.000000e+00 : f32
    %93 = vector.broadcast %cst_27 : f32 to vector<1x8x1xf32>
    %94 = arith.subf %93, %92 : vector<1x8x1xf32>
    %95 = arith.mulf %91, %94 : vector<1x8x1xf32>
    %96 = vector.broadcast %95 : vector<1x8x1xf32> to vector<1x8x8xf32>
    %97 = arith.mulf %88, %96 : vector<1x8x8xf32>
    %98 = arith.truncf %97 : vector<1x8x8xf32> to vector<1x8x8xbf16>
    "tpu.trace_start"() <{level = 10 : i32, message = "bij,bjd->bid"}> : () -> ()
    %cst_28 = arith.constant dense<0.000000e+00> : vector<1x8x32xf32>
    %99 = tpu.matmul %98, %82, %cst_28 {dimension_numbers = #tpu.dot_dimension_numbers<[2], [1], [1], [2], [0, 0, 0, 1, 1, 2], [0], [0]>} : vector<1x8x8xbf16>, vector<1x8x32xbf16>, vector<1x8x32xf32> -> vector<1x8x32xf32>
    "tpu.trace_stop"() : () -> ()
    %100 = vector.shape_cast %99 : vector<1x8x32xf32> to vector<8x32xf32>
    %101 = vector.extract_strided_slice %31 {offsets = [0, 0, 96], sizes = [1, 8, 32], strides = [1, 1, 1]} : vector<1x8x128xbf16> to vector<1x8x32xbf16>
    %102 = vector.extract_strided_slice %34 {offsets = [0, 0, 96], sizes = [1, 8, 32], strides = [1, 1, 1]} : vector<1x8x128xbf16> to vector<1x8x32xbf16>
    %103 = vector.extract_strided_slice %37 {offsets = [0, 0, 96], sizes = [1, 8, 32], strides = [1, 1, 1]} : vector<1x8x128xbf16> to vector<1x8x32xbf16>
    "tpu.trace_start"() <{level = 10 : i32, message = "bid,bjd->bij"}> : () -> ()
    %cst_29 = arith.constant dense<0.000000e+00> : vector<1x8x8xf32>
    %104 = tpu.matmul %101, %102, %cst_29 {dimension_numbers = #tpu.dot_dimension_numbers<[2], [2], [1], [1], [0, 0, 0, 1, 1, 1], [0], [0]>} : vector<1x8x32xbf16>, vector<1x8x32xbf16>, vector<1x8x8xf32> -> vector<1x8x8xf32>
    "tpu.trace_stop"() : () -> ()
    %cst_30 = arith.constant dense<0xFF800000> : vector<1x8xf32>
    %105 = vector.multi_reduction <maximumf>, %104, %cst_30 [2] : vector<1x8x8xf32> to vector<1x8xf32>
    %106 = vector.shape_cast %105 : vector<1x8xf32> to vector<1x8x1xf32>
    %107 = vector.broadcast %106 : vector<1x8x1xf32> to vector<1x8x8xf32>
    %108 = arith.subf %104, %107 : vector<1x8x8xf32>
    %109 = math.exp %108 : vector<1x8x8xf32>
    %cst_31 = arith.constant dense<0.000000e+00> : vector<1x8xf32>
    %110 = vector.multi_reduction <add>, %109, %cst_31 [2] : vector<1x8x8xf32> to vector<1x8xf32>
    %111 = vector.shape_cast %110 : vector<1x8xf32> to vector<1x8x1xf32>
    %112 = tpu.reciprocal %111 {approx = true} : vector<1x8x1xf32> -> vector<1x8x1xf32>
    %113 = arith.mulf %111, %112 : vector<1x8x1xf32>
    %cst_32 = arith.constant 2.000000e+00 : f32
    %114 = vector.broadcast %cst_32 : f32 to vector<1x8x1xf32>
    %115 = arith.subf %114, %113 : vector<1x8x1xf32>
    %116 = arith.mulf %112, %115 : vector<1x8x1xf32>
    %117 = vector.broadcast %116 : vector<1x8x1xf32> to vector<1x8x8xf32>
    %118 = arith.mulf %109, %117 : vector<1x8x8xf32>
    %119 = arith.truncf %118 : vector<1x8x8xf32> to vector<1x8x8xbf16>
    "tpu.trace_start"() <{level = 10 : i32, message = "bij,bjd->bid"}> : () -> ()
    %cst_33 = arith.constant dense<0.000000e+00> : vector<1x8x32xf32>
    %120 = tpu.matmul %119, %103, %cst_33 {dimension_numbers = #tpu.dot_dimension_numbers<[2], [1], [1], [2], [0, 0, 0, 1, 1, 2], [0], [0]>} : vector<1x8x8xbf16>, vector<1x8x32xbf16>, vector<1x8x32xf32> -> vector<1x8x32xf32>
    "tpu.trace_stop"() : () -> ()
    %121 = vector.shape_cast %120 : vector<1x8x32xf32> to vector<8x32xf32>
    %122 = tpu.concatenate %58, %79, %100, %121 in 1 : vector<8x32xf32>, vector<8x32xf32>, vector<8x32xf32>, vector<8x32xf32> -> vector<8x128xf32>
    %123 = arith.truncf %122 : vector<8x128xf32> to vector<8x128xbf16>
    %c0_34 = arith.constant 0 : index
    %c0_35 = arith.constant 0 : index
    %c0_36 = arith.constant 0 : index
    %124 = vector.load %arg5[%c0_34, %c0_35, %c0_36] : memref<1x128x128xbf16, #tpu.memory_space<vmem>>, vector<1x128x128xbf16>
    %125 = vector.shape_cast %124 : vector<1x128x128xbf16> to vector<128x128xbf16>
    %cst_37 = arith.constant dense<0.000000e+00> : vector<8x128xf32>
    %126 = tpu.matmul %123, %125, %cst_37 {dimension_numbers = #tpu.dot_dimension_numbers<[1], [0], [0], [1], [0, 0, 1, 1], [], []>} : vector<8x128xbf16>, vector<128x128xbf16>, vector<8x128xf32> -> vector<8x128xf32>
    %127 = arith.addf %4, %126 : vector<8x128xf32>
    %c0_38 = arith.constant 0 : index
    %c0_39 = arith.constant 0 : index
    %c0_40 = arith.constant 0 : index
    %128 = vector.load %arg6[%c0_38, %c0_39, %c0_40] : memref<1x1x128xf32, #tpu.memory_space<vmem>>, vector<1x1x128xf32>
    %129 = vector.shape_cast %128 : vector<1x1x128xf32> to vector<1x128xf32>
    %130 = vector.broadcast %129 : vector<1x128xf32> to vector<8x128xf32>
    %131 = arith.addf %127, %130 : vector<8x128xf32>
    %cst_41 = arith.constant dense<0.000000e+00> : vector<8xf32>
    %132 = vector.multi_reduction <add>, %131, %cst_41 [1] : vector<8x128xf32> to vector<8xf32>
    %133 = vector.shape_cast %132 : vector<8xf32> to vector<8x1xf32>
    %cst_42 = arith.constant 1.280000e+02 : f32
    %134 = vector.broadcast %cst_42 : f32 to vector<8x1xf32>
    %135 = arith.divf %133, %134 : vector<8x1xf32>
    %136 = vector.broadcast %135 : vector<8x1xf32> to vector<8x128xf32>
    %137 = arith.subf %131, %136 : vector<8x128xf32>
    %138 = arith.mulf %137, %137 : vector<8x128xf32>
    %cst_43 = arith.constant dense<0.000000e+00> : vector<8xf32>
    %139 = vector.multi_reduction <add>, %138, %cst_43 [1] : vector<8x128xf32> to vector<8xf32>
    %140 = vector.shape_cast %139 : vector<8xf32> to vector<8x1xf32>
    %cst_44 = arith.constant 1.280000e+02 : f32
    %141 = vector.broadcast %cst_44 : f32 to vector<8x1xf32>
    %142 = arith.divf %140, %141 : vector<8x1xf32>
    %cst_45 = arith.constant 9.99999974E-6 : f32
    %143 = vector.broadcast %cst_45 : f32 to vector<8x1xf32>
    %144 = arith.addf %142, %143 : vector<8x1xf32>
    %145 = math.rsqrt %144 : vector<8x1xf32>
    %146 = vector.broadcast %145 : vector<8x1xf32> to vector<8x128xf32>
    %147 = arith.mulf %137, %146 : vector<8x128xf32>
    %148 = arith.truncf %147 : vector<8x128xf32> to vector<8x128xbf16>
    %c0_46 = arith.constant 0 : index
    %c0_47 = arith.constant 0 : index
    %c0_48 = arith.constant 0 : index
    %149 = vector.load %arg7[%c0_46, %c0_47, %c0_48] : memref<1x128x128xbf16, #tpu.memory_space<vmem>>, vector<1x128x128xbf16>
    %150 = vector.shape_cast %149 : vector<1x128x128xbf16> to vector<128x128xbf16>
    %cst_49 = arith.constant dense<0.000000e+00> : vector<8x128xf32>
    %151 = tpu.matmul %148, %150, %cst_49 {dimension_numbers = #tpu.dot_dimension_numbers<[1], [0], [0], [1], [0, 0, 1, 1], [], []>} : vector<8x128xbf16>, vector<128x128xbf16>, vector<8x128xf32> -> vector<8x128xf32>
    %152 = arith.addf %131, %151 : vector<8x128xf32>
    %c0_50 = arith.constant 0 : index
    %c0_51 = arith.constant 0 : index
    %c0_52 = arith.constant 0 : index
    %153 = vector.load %arg8[%c0_50, %c0_51, %c0_52] : memref<1x1x128xf32, #tpu.memory_space<vmem>>, vector<1x1x128xf32>
    %154 = vector.shape_cast %153 : vector<1x1x128xf32> to vector<1x128xf32>
    %155 = vector.broadcast %154 : vector<1x128xf32> to vector<8x128xf32>
    %156 = arith.addf %152, %155 : vector<8x128xf32>
    %cst_53 = arith.constant dense<0.000000e+00> : vector<8xf32>
    %157 = vector.multi_reduction <add>, %156, %cst_53 [1] : vector<8x128xf32> to vector<8xf32>
    %158 = vector.shape_cast %157 : vector<8xf32> to vector<8x1xf32>
    %cst_54 = arith.constant 1.280000e+02 : f32
    %159 = vector.broadcast %cst_54 : f32 to vector<8x1xf32>
    %160 = arith.divf %158, %159 : vector<8x1xf32>
    %161 = vector.broadcast %160 : vector<8x1xf32> to vector<8x128xf32>
    %162 = arith.subf %156, %161 : vector<8x128xf32>
    %163 = arith.mulf %162, %162 : vector<8x128xf32>
    %cst_55 = arith.constant dense<0.000000e+00> : vector<8xf32>
    %164 = vector.multi_reduction <add>, %163, %cst_55 [1] : vector<8x128xf32> to vector<8xf32>
    %165 = vector.shape_cast %164 : vector<8xf32> to vector<8x1xf32>
    %cst_56 = arith.constant 1.280000e+02 : f32
    %166 = vector.broadcast %cst_56 : f32 to vector<8x1xf32>
    %167 = arith.divf %165, %166 : vector<8x1xf32>
    %cst_57 = arith.constant 9.99999974E-6 : f32
    %168 = vector.broadcast %cst_57 : f32 to vector<8x1xf32>
    %169 = arith.addf %167, %168 : vector<8x1xf32>
    %170 = math.rsqrt %169 : vector<8x1xf32>
    %171 = vector.broadcast %170 : vector<8x1xf32> to vector<8x128xf32>
    %172 = arith.mulf %162, %171 : vector<8x128xf32>
    %173 = arith.truncf %172 : vector<8x128xf32> to vector<8x128xbf16>
    %c0_58 = arith.constant 0 : index
    %c0_59 = arith.constant 0 : index
    %c0_60 = arith.constant 0 : index
    %174 = vector.load %arg9[%c0_58, %c0_59, %c0_60] : memref<1x128x256xbf16, #tpu.memory_space<vmem>>, vector<1x128x256xbf16>
    %175 = vector.shape_cast %174 : vector<1x128x256xbf16> to vector<128x256xbf16>
    %cst_61 = arith.constant dense<0.000000e+00> : vector<8x256xf32>
    %176 = tpu.matmul %173, %175, %cst_61 {dimension_numbers = #tpu.dot_dimension_numbers<[1], [0], [0], [1], [0, 0, 1, 1], [], []>} : vector<8x128xbf16>, vector<128x256xbf16>, vector<8x256xf32> -> vector<8x256xf32>
    %c0_62 = arith.constant 0 : index
    %c0_63 = arith.constant 0 : index
    %c0_64 = arith.constant 0 : index
    %177 = vector.load %arg10[%c0_62, %c0_63, %c0_64] : memref<1x1x256xf32, #tpu.memory_space<vmem>>, vector<1x1x256xf32>
    %178 = vector.shape_cast %177 : vector<1x1x256xf32> to vector<1x256xf32>
    %179 = vector.broadcast %178 : vector<1x256xf32> to vector<8x256xf32>
    %180 = arith.addf %176, %179 : vector<8x256xf32>
    %cst_65 = arith.constant 5.000000e-01 : f32
    %181 = vector.broadcast %cst_65 : f32 to vector<8x256xf32>
    %182 = arith.mulf %181, %180 : vector<8x256xf32>
    %cst_66 = arith.constant 4.471500e-02 : f32
    %183 = vector.broadcast %cst_66 : f32 to vector<8x256xf32>
    %184 = arith.mulf %183, %180 : vector<8x256xf32>
    %185 = arith.mulf %184, %180 : vector<8x256xf32>
    %186 = arith.mulf %185, %180 : vector<8x256xf32>
    %187 = arith.addf %180, %186 : vector<8x256xf32>
    %cst_67 = arith.constant 0.797884583 : f32
    %188 = vector.broadcast %cst_67 : f32 to vector<8x256xf32>
    %189 = arith.mulf %188, %187 : vector<8x256xf32>
    %190 = math.tanh %189 : vector<8x256xf32>
    %cst_68 = arith.constant 1.000000e+00 : f32
    %191 = vector.broadcast %cst_68 : f32 to vector<8x256xf32>
    %192 = arith.addf %191, %190 : vector<8x256xf32>
    %193 = arith.mulf %182, %192 : vector<8x256xf32>
    %194 = arith.truncf %193 : vector<8x256xf32> to vector<8x256xbf16>
    %c0_69 = arith.constant 0 : index
    %c0_70 = arith.constant 0 : index
    %c0_71 = arith.constant 0 : index
    %195 = vector.load %arg11[%c0_69, %c0_70, %c0_71] : memref<1x256x128xbf16, #tpu.memory_space<vmem>>, vector<1x256x128xbf16>
    %196 = vector.shape_cast %195 : vector<1x256x128xbf16> to vector<256x128xbf16>
    %cst_72 = arith.constant dense<0.000000e+00> : vector<8x128xf32>
    %197 = tpu.matmul %194, %196, %cst_72 {dimension_numbers = #tpu.dot_dimension_numbers<[1], [0], [0], [1], [0, 0, 1, 1], [], []>} : vector<8x256xbf16>, vector<256x128xbf16>, vector<8x128xf32> -> vector<8x128xf32>
    %198 = arith.addf %156, %197 : vector<8x128xf32>
    %c0_73 = arith.constant 0 : index
    %c0_74 = arith.constant 0 : index
    %c0_75 = arith.constant 0 : index
    %199 = vector.load %arg12[%c0_73, %c0_74, %c0_75] : memref<1x1x128xf32, #tpu.memory_space<vmem>>, vector<1x1x128xf32>
    %200 = vector.shape_cast %199 : vector<1x1x128xf32> to vector<1x128xf32>
    %201 = vector.broadcast %200 : vector<1x128xf32> to vector<8x128xf32>
    %202 = arith.addf %198, %201 : vector<8x128xf32>
    %203 = vector.shape_cast %202 : vector<8x128xf32> to vector<1x8x128xf32>
    %c0_76 = arith.constant 0 : index
    %c0_77 = arith.constant 0 : index
    %c0_78 = arith.constant 0 : index
    %204 = vector.load %arg13[%c0_76, %c0_77, %c0_78] : memref<1x8x128xf32, #tpu.memory_space<vmem>>, vector<1x8x128xf32>
    tpu.vector_store %arg13[%c0_76, %c0_77, %c0_78], %203 {strides = array<i32>} : memref<1x8x128xf32, #tpu.memory_space<vmem>>, vector<1x8x128xf32>,
    return
  }
  func.func @transform_0(%arg0: i32, %arg1: i32) -> (i32, i32, i32) {
    %c0_i32 = arith.constant 0 : i32
    %c0_i32_0 = arith.constant 0 : i32
    %c0_i32_1 = arith.constant 0 : i32
    return %arg0, %c0_i32, %c0_i32_0 : i32, i32, i32
  }
  func.func @transform_1(%arg0: i32, %arg1: i32) -> (i32, i32, i32) {
    %c0_i32 = arith.constant 0 : i32
    %c0_i32_0 = arith.constant 0 : i32
    %c0_i32_1 = arith.constant 0 : i32
    return %arg1, %c0_i32, %c0_i32_0 : i32, i32, i32
  }
  func.func @transform_2(%arg0: i32, %arg1: i32) -> (i32, i32, i32) {
    %c0_i32 = arith.constant 0 : i32
    %c0_i32_0 = arith.constant 0 : i32
    %c0_i32_1 = arith.constant 0 : i32
    return %arg1, %c0_i32, %c0_i32_0 : i32, i32, i32
  }
  func.func @transform_3(%arg0: i32, %arg1: i32) -> (i32, i32, i32) {
    %c0_i32 = arith.constant 0 : i32
    %c0_i32_0 = arith.constant 0 : i32
    %c0_i32_1 = arith.constant 0 : i32
    return %arg1, %c0_i32, %c0_i32_0 : i32, i32, i32
  }
  func.func @transform_4(%arg0: i32, %arg1: i32) -> (i32, i32, i32) {
    %c0_i32 = arith.constant 0 : i32
    %c0_i32_0 = arith.constant 0 : i32
    %c0_i32_1 = arith.constant 0 : i32
    return %arg1, %c0_i32, %c0_i32_0 : i32, i32, i32
  }
  func.func @transform_5(%arg0: i32, %arg1: i32) -> (i32, i32, i32) {
    %c0_i32 = arith.constant 0 : i32
    %c0_i32_0 = arith.constant 0 : i32
    %c0_i32_1 = arith.constant 0 : i32
    return %arg1, %c0_i32, %c0_i32_0 : i32, i32, i32
  }
  func.func @transform_6(%arg0: i32, %arg1: i32) -> (i32, i32, i32) {
    %c0_i32 = arith.constant 0 : i32
    %c0_i32_0 = arith.constant 0 : i32
    %c0_i32_1 = arith.constant 0 : i32
    return %arg1, %c0_i32, %c0_i32_0 : i32, i32, i32
  }
  func.func @transform_7(%arg0: i32, %arg1: i32) -> (i32, i32, i32) {
    %c0_i32 = arith.constant 0 : i32
    %c0_i32_0 = arith.constant 0 : i32
    %c0_i32_1 = arith.constant 0 : i32
    return %arg1, %c0_i32, %c0_i32_0 : i32, i32, i32
  }
  func.func @transform_8(%arg0: i32, %arg1: i32) -> (i32, i32, i32) {
    %c0_i32 = arith.constant 0 : i32
    %c0_i32_0 = arith.constant 0 : i32
    %c0_i32_1 = arith.constant 0 : i32
    return %arg1, %c0_i32, %c0_i32_0 : i32, i32, i32
  }
  func.func @transform_9(%arg0: i32, %arg1: i32) -> (i32, i32, i32) {
    %c0_i32 = arith.constant 0 : i32
    %c0_i32_0 = arith.constant 0 : i32
    %c0_i32_1 = arith.constant 0 : i32
    return %arg1, %c0_i32, %c0_i32_0 : i32, i32, i32
  }
  func.func @transform_10(%arg0: i32, %arg1: i32) -> (i32, i32, i32) {
    %c0_i32 = arith.constant 0 : i32
    %c0_i32_0 = arith.constant 0 : i32
    %c0_i32_1 = arith.constant 0 : i32
    return %arg1, %c0_i32, %c0_i32_0 : i32, i32, i32
  }
  func.func @transform_11(%arg0: i32, %arg1: i32) -> (i32, i32, i32) {
    %c0_i32 = arith.constant 0 : i32
    %c0_i32_0 = arith.constant 0 : i32
    %c0_i32_1 = arith.constant 0 : i32
    return %arg0, %c0_i32, %c0_i32_0 : i32, i32, i32
  }
}

</mosaic_0001>

<llo_original>
// kernel: fsa_transformer_encoder.1
$region0: #{fsa_transformer_encoder.1}
  #allocation0 [shape = 'u32[]', space=smem, size = 0x4, offset = 0x4, fixed_abs, tag = 'smem constant byte address 0x4 - core index']
  #allocation1 [shape = 'u32[144,128]{1,0:T(1,128)}', space=vmem, size = 0x12000, scoped, tag = 'internal scratch']
  %s0 = inlined_call_operand.vmem [shape: f32[2,8,128], index: 0, kind: input, shape index: {}]
  %s1 = inlined_call_operand.vmem [shape: bf16[2,128,384], index: 1, kind: input, shape index: {}]
  %s2 = inlined_call_operand.vmem [shape: f32[2,1,384], index: 2, kind: input, shape index: {}]
  %s3 = inlined_call_operand.vmem [shape: bf16[2,128,128], index: 3, kind: input, shape index: {}]
  %s4 = inlined_call_operand.vmem [shape: f32[2,1,128], index: 4, kind: input, shape index: {}]
  %s5 = inlined_call_operand.vmem [shape: bf16[2,128,128], index: 5, kind: input, shape index: {}]
  %s6 = inlined_call_operand.vmem [shape: f32[2,1,128], index: 6, kind: input, shape index: {}]
  %s7 = inlined_call_operand.vmem [shape: bf16[2,128,256], index: 7, kind: input, shape index: {}]
  %s8 = inlined_call_operand.vmem [shape: f32[2,1,256], index: 8, kind: input, shape index: {}]
  %s9 = inlined_call_operand.vmem [shape: bf16[2,256,128], index: 9, kind: input, shape index: {}]
  %s10 = inlined_call_operand.vmem [shape: f32[2,1,128], index: 10, kind: input, shape index: {}]
  %s11 = inlined_call_operand.hbm [shape: f32[2,8,128], index: 11, kind: output, shape index: {}]
  %s12 = sld [smem:[#allocation0]]
  $region81: #{fsa_transformer_encoder.1} parent=0
    _
  %s14 = ssub.s32 1, %s12
  %s15 = scalar_select 0, %s14, %s12
  $region1: #{fsa_transformer_encoder.1} parent=0
    #allocation2 [shape = 'u8[8192]{0}', space=vmem, size = 0x2000, scoped, tag = 'output window, operand 0']
    #allocation3 [shape = 's32[2]{0}', space=sflag, size = 0x8, scoped, tag = 'scoped memory for fsa_transformer_encoder.1']
    %16 = vsyncpa [#allocation3], 0
    %s17 = scalar_lea.sflag [#allocation3], 1
    %18 = vsyncpa %s17, 0
    loop: start=0, step=1, limit=6
    $region2: #{fsa_transformer_encoder.1} parent=1 // loop_pre_header
      _
    $region3: #{fsa_transformer_encoder.1} parent=1 // loop_header
      %s20 = sphi 0, %s24
      %p21 = scmp.ge.s32.totalorder %s20, 6
      %s27 = sphi 0, %s39
      %s28 = sphi 0, %s35
      %s29 = sphi 0, %s27
      %s30 = sphi 0, %s28
      %s31 = sphi 0, %s29
      %s32 = sphi 0, %s30
      %s42 = sphi 0, %s44
      %s45 = sphi 0, %s42
      %s46 = sphi 0, %s45
      %s62 = sphi 0, %s46
      %s68 = sphi 0, %s70
      %s71 = sphi 0, %s68
      %s72 = sphi 0, %s71
      %s88 = sphi 0, %s72
      %s94 = sphi 0, %s96
      %s97 = sphi 0, %s94
      %s98 = sphi 0, %s97
      %s114 = sphi 0, %s98
      %s120 = sphi 0, %s122
      %s123 = sphi 0, %s120
      %s124 = sphi 0, %s123
      %s140 = sphi 0, %s124
      %s146 = sphi 0, %s148
      %s149 = sphi 0, %s146
      %s150 = sphi 0, %s149
      %s166 = sphi 0, %s150
      %s172 = sphi 0, %s174
      %s175 = sphi 0, %s172
      %s176 = sphi 0, %s175
      %s192 = sphi 0, %s176
      %s198 = sphi 0, %s200
      %s201 = sphi 0, %s198
      %s202 = sphi 0, %s201
      %s218 = sphi 0, %s202
      %s224 = sphi 0, %s226
      %s227 = sphi 0, %s224
      %s228 = sphi 0, %s227
      %s244 = sphi 0, %s228
      %s250 = sphi 0, %s252
      %s253 = sphi 0, %s250
      %s254 = sphi 0, %s253
      %s270 = sphi 0, %s254
      %s276 = sphi 0, %s278
      %s279 = sphi 0, %s276
      %s280 = sphi 0, %s279
      %s296 = sphi 0, %s280
      %s302 = sphi 0, %s304
      %s305 = sphi 0, %s302
      %s306 = sphi 0, %s305
      %s322 = sphi 0, %s306
      %s328 = sphi 0, %s330
      %s331 = sphi 0, %s328
      %s332 = sphi 0, %s331
      %s348 = sphi 0, %s332
    $region4: #{fsa_transformer_encoder.1} parent=1 // loop_header_branch
      %23 = sbr.rel (%p21) target = $region8
    $region5: #{fsa_transformer_encoder.1} parent=1 // loop_body
      %s25 = ssub.s32 %s20, 1
      %s26 = ssub.s32 %s20, 2
      %s33 = sadd.s32 1, %s28
      %p34 = scmp.ge.s32.totalorder %s33, 2
      %s35 = scalar_select %p34, 0, %s33
      %s36 = sadd.s32 1, %s27
      %s37 = scalar_select %p34, %s36, %s27
      %p38 = scmp.ge.s32.totalorder %s37, 2
      %s39 = scalar_select %p38, 0, %s37
      %s40 = ssub.s32 %s27, %s39
      %p41 = scmp.eq.s32.totalorder %s40, 0
      %s43 = sadd.s32 %s42, 1
      %s44 = scalar_select %p41, %s42, %s43
      %p47 = pneg %p41
      %p48 = scmp.eq.s32.totalorder %s20, 3
      %p49 = por %p47, %p48
      %p50 = scmp.ne.s32.totalorder %s42, %s45
      %p51 = scmp.eq.s32.totalorder %s20, 0
      %p52 = por %p50, %p51
      %p53 = scmp.ne.s32.totalorder %s42, %s45
      %p54 = scmp.eq.s32.totalorder %s25, 3
      %p55 = por %p53, %p54
      %p56 = scmp.ne.s32.totalorder %s45, %s46
      %p57 = scmp.eq.s32.totalorder %s25, 0
      %p58 = por %p56, %p57
      %p59 = scmp.ne.s32.totalorder %s45, %s46
      %p60 = scmp.eq.s32.totalorder %s26, 3
      %p61 = por %p59, %p60
      %p63 = scmp.ne.s32.totalorder %s46, %s62
      %p64 = scmp.eq.s32.totalorder %s26, 0
      %p65 = por %p63, %p64
      %s66 = ssub.s32 %s28, %s35
      %p67 = scmp.eq.s32.totalorder %s66, 0
      %s69 = sadd.s32 %s68, 1
      %s70 = scalar_select %p67, %s68, %s69
      %p73 = pneg %p67
      %p74 = scmp.eq.s32.totalorder %s20, 3
      %p75 = por %p73, %p74
      %p76 = scmp.ne.s32.totalorder %s68, %s71
      %p77 = scmp.eq.s32.totalorder %s20, 0
      %p78 = por %p76, %p77
      %p79 = scmp.ne.s32.totalorder %s68, %s71
      %p80 = scmp.eq.s32.totalorder %s25, 3
      %p81 = por %p79, %p80
      %p82 = scmp.ne.s32.totalorder %s71, %s72
      %p83 = scmp.eq.s32.totalorder %s25, 0
      %p84 = por %p82, %p83
      %p85 = scmp.ne.s32.totalorder %s71, %s72
      %p86 = scmp.eq.s32.totalorder %s26, 3
      %p87 = por %p85, %p86
      %p89 = scmp.ne.s32.totalorder %s72, %s88
      %p90 = scmp.eq.s32.totalorder %s26, 0
      %p91 = por %p89, %p90
      %s92 = ssub.s32 %s28, %s35
      %p93 = scmp.eq.s32.totalorder %s92, 0
      %s95 = sadd.s32 %s94, 1
      %s96 = scalar_select %p93, %s94, %s95
      %p99 = pneg %p93
      %p100 = scmp.eq.s32.totalorder %s20, 3
      %p101 = por %p99, %p100
      %p102 = scmp.ne.s32.totalorder %s94, %s97
      %p103 = scmp.eq.s32.totalorder %s20, 0
      %p104 = por %p102, %p103
      %p105 = scmp.ne.s32.totalorder %s94, %s97
      %p106 = scmp.eq.s32.totalorder %s25, 3
      %p107 = por %p105, %p106
      %p108 = scmp.ne.s32.totalorder %s97, %s98
      %p109 = scmp.eq.s32.totalorder %s25, 0
      %p110 = por %p108, %p109
      %p111 = scmp.ne.s32.totalorder %s97, %s98
      %p112 = scmp.eq.s32.totalorder %s26, 3
      %p113 = por %p111, %p112
      %p115 = scmp.ne.s32.totalorder %s98, %s114
      %p116 = scmp.eq.s32.totalorder %s26, 0
      %p117 = por %p115, %p116
      %s118 = ssub.s32 %s28, %s35
      %p119 = scmp.eq.s32.totalorder %s118, 0
      %s121 = sadd.s32 %s120, 1
      %s122 = scalar_select %p119, %s120, %s121
      %p125 = pneg %p119
      %p126 = scmp.eq.s32.totalorder %s20, 3
      %p127 = por %p125, %p126
      %p128 = scmp.ne.s32.totalorder %s120, %s123
      %p129 = scmp.eq.s32.totalorder %s20, 0
      %p130 = por %p128, %p129
      %p131 = scmp.ne.s32.totalorder %s120, %s123
      %p132 = scmp.eq.s32.totalorder %s25, 3
      %p133 = por %p131, %p132
      %p134 = scmp.ne.s32.totalorder %s123, %s124
      %p135 = scmp.eq.s32.totalorder %s25, 0
      %p136 = por %p134, %p135
      %p137 = scmp.ne.s32.totalorder %s123, %s124
      %p138 = scmp.eq.s32.totalorder %s26, 3
      %p139 = por %p137, %p138
      %p141 = scmp.ne.s32.totalorder %s124, %s140
      %p142 = scmp.eq.s32.totalorder %s26, 0
      %p143 = por %p141, %p142
      %s144 = ssub.s32 %s28, %s35
      %p145 = scmp.eq.s32.totalorder %s144, 0
      %s147 = sadd.s32 %s146, 1
      %s148 = scalar_select %p145, %s146, %s147
      %p151 = pneg %p145
      %p152 = scmp.eq.s32.totalorder %s20, 3
      %p153 = por %p151, %p152
      %p154 = scmp.ne.s32.totalorder %s146, %s149
      %p155 = scmp.eq.s32.totalorder %s20, 0
      %p156 = por %p154, %p155
      %p157 = scmp.ne.s32.totalorder %s146, %s149
      %p158 = scmp.eq.s32.totalorder %s25, 3
      %p159 = por %p157, %p158
      %p160 = scmp.ne.s32.totalorder %s149, %s150
      %p161 = scmp.eq.s32.totalorder %s25, 0
      %p162 = por %p160, %p161
      %p163 = scmp.ne.s32.totalorder %s149, %s150
      %p164 = scmp.eq.s32.totalorder %s26, 3
      %p165 = por %p163, %p164
      %p167 = scmp.ne.s32.totalorder %s150, %s166
      %p168 = scmp.eq.s32.totalorder %s26, 0
      %p169 = por %p167, %p168
      %s170 = ssub.s32 %s28, %s35
      %p171 = scmp.eq.s32.totalorder %s170, 0
      %s173 = sadd.s32 %s172, 1
      %s174 = scalar_select %p171, %s172, %s173
      %p177 = pneg %p171
      %p178 = scmp.eq.s32.totalorder %s20, 3
      %p179 = por %p177, %p178
      %p180 = scmp.ne.s32.totalorder %s172, %s175
      %p181 = scmp.eq.s32.totalorder %s20, 0
      %p182 = por %p180, %p181
      %p183 = scmp.ne.s32.totalorder %s172, %s175
      %p184 = scmp.eq.s32.totalorder %s25, 3
      %p185 = por %p183, %p184
      %p186 = scmp.ne.s32.totalorder %s175, %s176
      %p187 = scmp.eq.s32.totalorder %s25, 0
      %p188 = por %p186, %p187
      %p189 = scmp.ne.s32.totalorder %s175, %s176
      %p190 = scmp.eq.s32.totalorder %s26, 3
      %p191 = por %p189, %p190
      %p193 = scmp.ne.s32.totalorder %s176, %s192
      %p194 = scmp.eq.s32.totalorder %s26, 0
      %p195 = por %p193, %p194
      %s196 = ssub.s32 %s28, %s35
      %p197 = scmp.eq.s32.totalorder %s196, 0
      %s199 = sadd.s32 %s198, 1
      %s200 = scalar_select %p197, %s198, %s199
      %p203 = pneg %p197
      %p204 = scmp.eq.s32.totalorder %s20, 3
      %p205 = por %p203, %p204
      %p206 = scmp.ne.s32.totalorder %s198, %s201
      %p207 = scmp.eq.s32.totalorder %s20, 0
      %p208 = por %p206, %p207
      %p209 = scmp.ne.s32.totalorder %s198, %s201
      %p210 = scmp.eq.s32.totalorder %s25, 3
      %p211 = por %p209, %p210
      %p212 = scmp.ne.s32.totalorder %s201, %s202
      %p213 = scmp.eq.s32.totalorder %s25, 0
      %p214 = por %p212, %p213
      %p215 = scmp.ne.s32.totalorder %s201, %s202
      %p216 = scmp.eq.s32.totalorder %s26, 3
      %p217 = por %p215, %p216
      %p219 = scmp.ne.s32.totalorder %s202, %s218
      %p220 = scmp.eq.s32.totalorder %s26, 0
      %p221 = por %p219, %p220
      %s222 = ssub.s32 %s28, %s35
      %p223 = scmp.eq.s32.totalorder %s222, 0
      %s225 = sadd.s32 %s224, 1
      %s226 = scalar_select %p223, %s224, %s225
      %p229 = pneg %p223
      %p230 = scmp.eq.s32.totalorder %s20, 3
      %p231 = por %p229, %p230
      %p232 = scmp.ne.s32.totalorder %s224, %s227
      %p233 = scmp.eq.s32.totalorder %s20, 0
      %p234 = por %p232, %p233
      %p235 = scmp.ne.s32.totalorder %s224, %s227
      %p236 = scmp.eq.s32.totalorder %s25, 3
      %p237 = por %p235, %p236
      %p238 = scmp.ne.s32.totalorder %s227, %s228
      %p239 = scmp.eq.s32.totalorder %s25, 0
      %p240 = por %p238, %p239
      %p241 = scmp.ne.s32.totalorder %s227, %s228
      %p242 = scmp.eq.s32.totalorder %s26, 3
      %p243 = por %p241, %p242
      %p245 = scmp.ne.s32.totalorder %s228, %s244
      %p246 = scmp.eq.s32.totalorder %s26, 0
      %p247 = por %p245, %p246
      %s248 = ssub.s32 %s28, %s35
      %p249 = scmp.eq.s32.totalorder %s248, 0
      %s251 = sadd.s32 %s250, 1
      %s252 = scalar_select %p249, %s250, %s251
      %p255 = pneg %p249
      %p256 = scmp.eq.s32.totalorder %s20, 3
      %p257 = por %p255, %p256
      %p258 = scmp.ne.s32.totalorder %s250, %s253
      %p259 = scmp.eq.s32.totalorder %s20, 0
      %p260 = por %p258, %p259
      %p261 = scmp.ne.s32.totalorder %s250, %s253
      %p262 = scmp.eq.s32.totalorder %s25, 3
      %p263 = por %p261, %p262
      %p264 = scmp.ne.s32.totalorder %s253, %s254
      %p265 = scmp.eq.s32.totalorder %s25, 0
      %p266 = por %p264, %p265
      %p267 = scmp.ne.s32.totalorder %s253, %s254
      %p268 = scmp.eq.s32.totalorder %s26, 3
      %p269 = por %p267, %p268
      %p271 = scmp.ne.s32.totalorder %s254, %s270
      %p272 = scmp.eq.s32.totalorder %s26, 0
      %p273 = por %p271, %p272
      %s274 = ssub.s32 %s28, %s35
      %p275 = scmp.eq.s32.totalorder %s274, 0
      %s277 = sadd.s32 %s276, 1
      %s278 = scalar_select %p275, %s276, %s277
      %p281 = pneg %p275
      %p282 = scmp.eq.s32.totalorder %s20, 3
      %p283 = por %p281, %p282
      %p284 = scmp.ne.s32.totalorder %s276, %s279
      %p285 = scmp.eq.s32.totalorder %s20, 0
      %p286 = por %p284, %p285
      %p287 = scmp.ne.s32.totalorder %s276, %s279
      %p288 = scmp.eq.s32.totalorder %s25, 3
      %p289 = por %p287, %p288
      %p290 = scmp.ne.s32.totalorder %s279, %s280
      %p291 = scmp.eq.s32.totalorder %s25, 0
      %p292 = por %p290, %p291
      %p293 = scmp.ne.s32.totalorder %s279, %s280
      %p294 = scmp.eq.s32.totalorder %s26, 3
      %p295 = por %p293, %p294
      %p297 = scmp.ne.s32.totalorder %s280, %s296
      %p298 = scmp.eq.s32.totalorder %s26, 0
      %p299 = por %p297, %p298
      %s300 = ssub.s32 %s28, %s35
      %p301 = scmp.eq.s32.totalorder %s300, 0
      %s303 = sadd.s32 %s302, 1
      %s304 = scalar_select %p301, %s302, %s303
      %p307 = pneg %p301
      %p308 = scmp.eq.s32.totalorder %s20, 3
      %p309 = por %p307, %p308
      %p310 = scmp.ne.s32.totalorder %s302, %s305
      %p311 = scmp.eq.s32.totalorder %s20, 0
      %p312 = por %p310, %p311
      %p313 = scmp.ne.s32.totalorder %s302, %s305
      %p314 = scmp.eq.s32.totalorder %s25, 3
      %p315 = por %p313, %p314
      %p316 = scmp.ne.s32.totalorder %s305, %s306
      %p317 = scmp.eq.s32.totalorder %s25, 0
      %p318 = por %p316, %p317
      %p319 = scmp.ne.s32.totalorder %s305, %s306
      %p320 = scmp.eq.s32.totalorder %s26, 3
      %p321 = por %p319, %p320
      %p323 = scmp.ne.s32.totalorder %s306, %s322
      %p324 = scmp.eq.s32.totalorder %s26, 0
      %p325 = por %p323, %p324
      %s326 = ssub.s32 %s27, %s39
      %p327 = scmp.eq.s32.totalorder %s326, 0
      %s329 = sadd.s32 %s328, 1
      %s330 = scalar_select %p327, %s328, %s329
      %p333 = pneg %p327
      %p334 = scmp.eq.s32.totalorder %s20, 3
      %p335 = por %p333, %p334
      %p336 = scmp.ne.s32.totalorder %s328, %s331
      %p337 = scmp.eq.s32.totalorder %s20, 0
      %p338 = por %p336, %p337
      %p339 = scmp.ne.s32.totalorder %s328, %s331
      %p340 = scmp.eq.s32.totalorder %s25, 3
      %p341 = por %p339, %p340
      %p342 = scmp.ne.s32.totalorder %s331, %s332
      %p343 = scmp.eq.s32.totalorder %s25, 0
      %p344 = por %p342, %p343
      %p345 = scmp.ne.s32.totalorder %s331, %s332
      %p346 = scmp.eq.s32.totalorder %s26, 3
      %p347 = por %p345, %p346
      %p349 = scmp.ne.s32.totalorder %s332, %s348
      %p350 = scmp.eq.s32.totalorder %s26, 0
      %p351 = por %p349, %p350
      %p352 = scmp.le.s32.totalorder 1, %s20
      %p353 = scmp.lt.s32.totalorder %s20, 5
      %p354 = pnand %p352, %p353
      %p355 = pneg %p354
      // Predicated region
      $region9: #{fsa_transformer_encoder.1} parent=5 // pred_check
        _
      $region10: #{fsa_transformer_encoder.1} parent=5 // pred_check_branch
        %357 = sbr.rel (%p354) target = $region12
      $region11: #{fsa_transformer_encoder.1} parent=5 // pred_region
        %s358 = ssub.s32 %s20, 1
      $region12: #{fsa_transformer_encoder.1} parent=5 // pred_fallthru
        _
      %p359 = scmp.lt.s32.totalorder %s20, 4
      // Predicated region
      $region13: #{fsa_transformer_encoder.1} parent=5 // pred_check
        %p360 = pneg %p359
      $region14: #{fsa_transformer_encoder.1} parent=5 // pred_check_branch
        %362 = sbr.rel (%p360) target = $region16
      $region15: #{fsa_transformer_encoder.1} parent=5 // pred_region
        // Predicated region
        $region17: #{fsa_transformer_encoder.1} parent=15 // pred_check
          %p363 = pneg %p52
        $region18: #{fsa_transformer_encoder.1} parent=15 // pred_check_branch
          %365 = sbr.rel (%p363) target = $region20
        $region19: #{fsa_transformer_encoder.1} parent=15 // pred_region
          %p366 = scmp.lt.s32.totalorder %s27, 1
          %s367 = scalar_select %p366, %s27, 1
          %s368 = smul.addr %s367, 8
          %s369 = scalar_lea.vmem %s0, %s368
        $region20: #{fsa_transformer_encoder.1} parent=15 // pred_fallthru
          _
        // Predicated region
        $region21: #{fsa_transformer_encoder.1} parent=15 // pred_check
          %p370 = pneg %p78
        $region22: #{fsa_transformer_encoder.1} parent=15 // pred_check_branch
          %372 = sbr.rel (%p370) target = $region24
        $region23: #{fsa_transformer_encoder.1} parent=15 // pred_region
          %p373 = scmp.lt.s32.totalorder %s28, 1
          %s374 = scalar_select %p373, %s28, 1
          %s375 = smul.addr %s374, 48
          %s376 = smul.addr %s375, 4
          %s377 = scalar_lea.vmem %s1, %s376
        $region24: #{fsa_transformer_encoder.1} parent=15 // pred_fallthru
          _
        // Predicated region
        $region25: #{fsa_transformer_encoder.1} parent=15 // pred_check
          %p378 = pneg %p104
        $region26: #{fsa_transformer_encoder.1} parent=15 // pred_check_branch
          %380 = sbr.rel (%p378) target = $region28
        $region27: #{fsa_transformer_encoder.1} parent=15 // pred_region
          %p381 = scmp.lt.s32.totalorder %s28, 1
          %s382 = scalar_select %p381, %s28, 1
          %s383 = smul.addr %s382, 3
          %s384 = scalar_lea.vmem %s2, %s383
        $region28: #{fsa_transformer_encoder.1} parent=15 // pred_fallthru
          _
        // Predicated region
        $region29: #{fsa_transformer_encoder.1} parent=15 // pred_check
          %p385 = pneg %p130
        $region30: #{fsa_transformer_encoder.1} parent=15 // pred_check_branch
          %387 = sbr.rel (%p385) target = $region32
        $region31: #{fsa_transformer_encoder.1} parent=15 // pred_region
          %p388 = scmp.lt.s32.totalorder %s28, 1
          %s389 = scalar_select %p388, %s28, 1
          %s390 = smul.addr %s389, 16
          %s391 = smul.addr %s390, 4
          %s392 = scalar_lea.vmem %s3, %s391
        $region32: #{fsa_transformer_encoder.1} parent=15 // pred_fallthru
          _
        // Predicated region
        $region33: #{fsa_transformer_encoder.1} parent=15 // pred_check
          %p393 = pneg %p156
        $region34: #{fsa_transformer_encoder.1} parent=15 // pred_check_branch
          %395 = sbr.rel (%p393) target = $region36
        $region35: #{fsa_transformer_encoder.1} parent=15 // pred_region
          %p396 = scmp.lt.s32.totalorder %s28, 1
          %s397 = scalar_select %p396, %s28, 1
          %s398 = scalar_lea.vmem %s4, %s397
        $region36: #{fsa_transformer_encoder.1} parent=15 // pred_fallthru
          _
        // Predicated region
        $region37: #{fsa_transformer_encoder.1} parent=15 // pred_check
          %p399 = pneg %p182
        $region38: #{fsa_transformer_encoder.1} parent=15 // pred_check_branch
          %401 = sbr.rel (%p399) target = $region40
        $region39: #{fsa_transformer_encoder.1} parent=15 // pred_region
          %p402 = scmp.lt.s32.totalorder %s28, 1
          %s403 = scalar_select %p402, %s28, 1
          %s404 = smul.addr %s403, 16
          %s405 = smul.addr %s404, 4
          %s406 = scalar_lea.vmem %s5, %s405
        $region40: #{fsa_transformer_encoder.1} parent=15 // pred_fallthru
          _
        // Predicated region
        $region41: #{fsa_transformer_encoder.1} parent=15 // pred_check
          %p407 = pneg %p208
        $region42: #{fsa_transformer_encoder.1} parent=15 // pred_check_branch
          %409 = sbr.rel (%p407) target = $region44
        $region43: #{fsa_transformer_encoder.1} parent=15 // pred_region
          %p410 = scmp.lt.s32.totalorder %s28, 1
          %s411 = scalar_select %p410, %s28, 1
          %s412 = scalar_lea.vmem %s6, %s411
        $region44: #{fsa_transformer_encoder.1} parent=15 // pred_fallthru
          _
        // Predicated region
        $region45: #{fsa_transformer_encoder.1} parent=15 // pred_check
          %p413 = pneg %p234
        $region46: #{fsa_transformer_encoder.1} parent=15 // pred_check_branch
          %415 = sbr.rel (%p413) target = $region48
        $region47: #{fsa_transformer_encoder.1} parent=15 // pred_region
          %p416 = scmp.lt.s32.totalorder %s28, 1
          %s417 = scalar_select %p416, %s28, 1
          %s418 = smul.addr %s417, 32
          %s419 = smul.addr %s418, 4
          %s420 = scalar_lea.vmem %s7, %s419
        $region48: #{fsa_transformer_encoder.1} parent=15 // pred_fallthru
          _
        // Predicated region
        $region49: #{fsa_transformer_encoder.1} parent=15 // pred_check
          %p421 = pneg %p260
        $region50: #{fsa_transformer_encoder.1} parent=15 // pred_check_branch
          %423 = sbr.rel (%p421) target = $region52
        $region51: #{fsa_transformer_encoder.1} parent=15 // pred_region
          %p424 = scmp.lt.s32.totalorder %s28, 1
          %s425 = scalar_select %p424, %s28, 1
          %s426 = smul.addr %s425, 2
          %s427 = scalar_lea.vmem %s8, %s426
        $region52: #{fsa_transformer_encoder.1} parent=15 // pred_fallthru
          _
        // Predicated region
        $region53: #{fsa_transformer_encoder.1} parent=15 // pred_check
          %p428 = pneg %p286
        $region54: #{fsa_transformer_encoder.1} parent=15 // pred_check_branch
          %430 = sbr.rel (%p428) target = $region56
        $region55: #{fsa_transformer_encoder.1} parent=15 // pred_region
          %p431 = scmp.lt.s32.totalorder %s28, 1
          %s432 = scalar_select %p431, %s28, 1
          %s433 = smul.addr %s432, 32
          %s434 = smul.addr %s433, 4
          %s435 = scalar_lea.vmem %s9, %s434
        $region56: #{fsa_transformer_encoder.1} parent=15 // pred_fallthru
          _
        // Predicated region
        $region57: #{fsa_transformer_encoder.1} parent=15 // pred_check
          %p436 = pneg %p312
        $region58: #{fsa_transformer_encoder.1} parent=15 // pred_check_branch
          %438 = sbr.rel (%p436) target = $region60
        $region59: #{fsa_transformer_encoder.1} parent=15 // pred_region
          %p439 = scmp.lt.s32.totalorder %s28, 1
          %s440 = scalar_select %p439, %s28, 1
          %s441 = scalar_lea.vmem %s10, %s440
        $region60: #{fsa_transformer_encoder.1} parent=15 // pred_fallthru
          _
      $region16: #{fsa_transformer_encoder.1} parent=5 // pred_fallthru
        _
      %p442 = scmp.le.s32.totalorder 1, %s20
      %p443 = scmp.lt.s32.totalorder %s20, 5
      %p444 = pnand %p442, %p443
      %p445 = pneg %p444
      // Predicated region
      $region61: #{fsa_transformer_encoder.1} parent=5 // pred_check
        _
      $region62: #{fsa_transformer_encoder.1} parent=5 // pred_check_branch
        %447 = sbr.rel (%p444) target = $region64
      $region63: #{fsa_transformer_encoder.1} parent=5 // pred_region
        %s448 = ssub.s32 %s20, 1
        %p449 = scmp.lt.s32.totalorder %s29, 1
        %s450 = scalar_select %p449, %s29, 1
        %s451 = smul.addr %s450, 8
        %s452 = scalar_lea.vmem %s0, %s451
        %p453 = pneg %p58
        %p454 = pneg %p55
        %p455 = scmp.lt.s32.totalorder %s30, 1
        %s456 = scalar_select %p455, %s30, 1
        %s457 = smul.addr %s456, 48
        %s458 = smul.addr %s457, 4
        %s459 = scalar_lea.vmem %s1, %s458
        %p460 = pneg %p84
        %p461 = pneg %p81
        %p462 = scmp.lt.s32.totalorder %s30, 1
        %s463 = scalar_select %p462, %s30, 1
        %s464 = smul.addr %s463, 3
        %s465 = scalar_lea.vmem %s2, %s464
        %p466 = pneg %p110
        %p467 = pneg %p107
        %p468 = scmp.lt.s32.totalorder %s30, 1
        %s469 = scalar_select %p468, %s30, 1
        %s470 = smul.addr %s469, 16
        %s471 = smul.addr %s470, 4
        %s472 = scalar_lea.vmem %s3, %s471
        %p473 = pneg %p136
        %p474 = pneg %p133
        %p475 = scmp.lt.s32.totalorder %s30, 1
        %s476 = scalar_select %p475, %s30, 1
        %s477 = scalar_lea.vmem %s4, %s476
        %p478 = pneg %p162
        %p479 = pneg %p159
        %p480 = scmp.lt.s32.totalorder %s30, 1
        %s481 = scalar_select %p480, %s30, 1
        %s482 = smul.addr %s481, 16
        %s483 = smul.addr %s482, 4
        %s484 = scalar_lea.vmem %s5, %s483
        %p485 = pneg %p188
        %p486 = pneg %p185
        %p487 = scmp.lt.s32.totalorder %s30, 1
        %s488 = scalar_select %p487, %s30, 1
        %s489 = scalar_lea.vmem %s6, %s488
        %p490 = pneg %p214
        %p491 = pneg %p211
        %p492 = scmp.lt.s32.totalorder %s30, 1
        %s493 = scalar_select %p492, %s30, 1
        %s494 = smul.addr %s493, 32
        %s495 = smul.addr %s494, 4
        %s496 = scalar_lea.vmem %s7, %s495
        %p497 = pneg %p240
        %p498 = pneg %p237
        %p499 = scmp.lt.s32.totalorder %s30, 1
        %s500 = scalar_select %p499, %s30, 1
        %s501 = smul.addr %s500, 2
        %s502 = scalar_lea.vmem %s8, %s501
        %p503 = pneg %p266
        %p504 = pneg %p263
        %p505 = scmp.lt.s32.totalorder %s30, 1
        %s506 = scalar_select %p505, %s30, 1
        %s507 = smul.addr %s506, 32
        %s508 = smul.addr %s507, 4
        %s509 = scalar_lea.vmem %s9, %s508
        %p510 = pneg %p292
        %p511 = pneg %p289
        %p512 = scmp.lt.s32.totalorder %s30, 1
        %s513 = scalar_select %p512, %s30, 1
        %s514 = scalar_lea.vmem %s10, %s513
        %p515 = pneg %p318
        %p516 = pneg %p315
        %p517 = pneg %p344
        %p518 = pneg %p341
        %s519 = sand.u32 %s331, 1
        %s520 = scalar_lea.sflag [#allocation3], %s519
        %s521 = sand.u32 %s331, 1
        %s522 = smul.addr %s521, 8
        %s523 = scalar_lea.vmem [#allocation2], %s522
        %p524 = scmp.lt.s32.totalorder %s29, 1
        %s525 = scalar_select %p524, %s29, 1
        %s526 = smul.addr %s525, 8
        %s527 = scalar_lea.vmem %s0, %s526
        %p528 = scmp.lt.s32.totalorder %s30, 1
        %s529 = scalar_select %p528, %s30, 1
        %s530 = smul.addr %s529, 48
        %s531 = smul.addr %s530, 4
        %s532 = scalar_lea.vmem %s1, %s531
        %p533 = scmp.lt.s32.totalorder %s30, 1
        %s534 = scalar_select %p533, %s30, 1
        %s535 = smul.addr %s534, 3
        %s536 = scalar_lea.vmem %s2, %s535
        %p537 = scmp.lt.s32.totalorder %s30, 1
        %s538 = scalar_select %p537, %s30, 1
        %s539 = smul.addr %s538, 16
        %s540 = smul.addr %s539, 4
        %s541 = scalar_lea.vmem %s3, %s540
        %p542 = scmp.lt.s32.totalorder %s30, 1
        %s543 = scalar_select %p542, %s30, 1
        %s544 = scalar_lea.vmem %s4, %s543
        %p545 = scmp.lt.s32.totalorder %s30, 1
        %s546 = scalar_select %p545, %s30, 1
        %s547 = smul.addr %s546, 16
        %s548 = smul.addr %s547, 4
        %s549 = scalar_lea.vmem %s5, %s548
        %p550 = scmp.lt.s32.totalorder %s30, 1
        %s551 = scalar_select %p550, %s30, 1
        %s552 = scalar_lea.vmem %s6, %s551
        %p553 = scmp.lt.s32.totalorder %s30, 1
        %s554 = scalar_select %p553, %s30, 1
        %s555 = smul.addr %s554, 32
        %s556 = smul.addr %s555, 4
        %s557 = scalar_lea.vmem %s7, %s556
        %p558 = scmp.lt.s32.totalorder %s30, 1
        %s559 = scalar_select %p558, %s30, 1
        %s560 = smul.addr %s559, 2
        %s561 = scalar_lea.vmem %s8, %s560
        %p562 = scmp.lt.s32.totalorder %s30, 1
        %s563 = scalar_select %p562, %s30, 1
        %s564 = smul.addr %s563, 32
        %s565 = smul.addr %s564, 4
        %s566 = scalar_lea.vmem %s9, %s565
        %p567 = scmp.lt.s32.totalorder %s30, 1
        %s568 = scalar_select %p567, %s30, 1
        %s569 = scalar_lea.vmem %s10, %s568
        %p571 = scmp.eq.s32.totalorder %s30, 0
        // Predicated region
        $region65: #{fsa_transformer_encoder.1} parent=63 // pred_check
          %p572 = pneg %p571
        $region66: #{fsa_transformer_encoder.1} parent=63 // pred_check_branch
          %574 = sbr.rel (%p572) target = $region68
        $region67: #{fsa_transformer_encoder.1} parent=63 // pred_region
          %v575 = vld [vmem:[%s527] sm:$0xff]
          %576 = vst [vmem:[%s523] sm:$0xff] %v575
        $region68: #{fsa_transformer_encoder.1} parent=63 // pred_fallthru
          _
        %v577 = vld [vmem:[%s523] sm:$0xff]
        %578 = vadd.xlane.f32.xlu0 %v577
        %v579 = vpop.xlane.xlu0 %578
        %v580 = vrcp.pop 128.0
        %v581 = vmul.f32 %v579, %v580
        %v582 = vsub.f32 %v577, %v581
        %v583 = vmul.f32 %v582, %v582
        %584 = vadd.xlane.f32.xlu0 %v583
        %v585 = vpop.xlane.xlu0 %584
        %v586 = vmul.f32 %v585, %v580
        %v587 = vadd.f32 %v586, 1e-05
        %v588 = vrsqrt.pop %v587
        %v589 = vmul.f32 %v582, %v588
        %v590 = vpack.c.bf16 %v589, %v589
        %v591 = vld [vmem:[%s532] sm:$0xff]
        %v592 = vld [vmem:[%s532 + $0x8] sm:$0xf]
        %v593 = vld [vmem:[%s532 + $0xc] sm:$0xff]
        %v594 = vld [vmem:[%s532 + $0x14] sm:$0xf]
        %v595 = vld [vmem:[%s532 + $0x18] sm:$0xff]
        %v596 = vld [vmem:[%s532 + $0x20] sm:$0xf]
        %v597 = vld [vmem:[%s532 + $0x24] sm:$0xff]
        %v598 = vld [vmem:[%s532 + $0x2c] sm:$0xf]
        %v599 = vld [vmem:[%s532 + $0x30] sm:$0xff]
        %v600 = vld [vmem:[%s532 + $0x38] sm:$0xf]
        %v601 = vld [vmem:[%s532 + $0x3c] sm:$0xff]
        %v602 = vld [vmem:[%s532 + $0x44] sm:$0xf]
        %v603 = vld [vmem:[%s532 + $0x48] sm:$0xff]
        %v604 = vld [vmem:[%s532 + $0x50] sm:$0xf]
        %v605 = vld [vmem:[%s532 + $0x54] sm:$0xff]
        %v606 = vld [vmem:[%s532 + $0x5c] sm:$0xf]
        %v607 = vld [vmem:[%s532 + $0x60] sm:$0xff]
        %v608 = vld [vmem:[%s532 + $0x68] sm:$0xf]
        %v609 = vld [vmem:[%s532 + $0x6c] sm:$0xff]
        %v610 = vld [vmem:[%s532 + $0x74] sm:$0xf]
        %v611 = vld [vmem:[%s532 + $0x78] sm:$0xff]
        %v612 = vld [vmem:[%s532 + $0x80] sm:$0xf]
        %v613 = vld [vmem:[%s532 + $0x84] sm:$0xff]
        %v614 = vld [vmem:[%s532 + $0x8c] sm:$0xf]
        %v615 = vld [vmem:[%s532 + $0x90] sm:$0xff]
        %v616 = vld [vmem:[%s532 + $0x98] sm:$0xf]
        %v617 = vld [vmem:[%s532 + $0x9c] sm:$0xff]
        %v618 = vld [vmem:[%s532 + $0xa4] sm:$0xf]
        %v619 = vld [vmem:[%s532 + $0xa8] sm:$0xff]
        %v620 = vld [vmem:[%s532 + $0xb0] sm:$0xf]
        %v621 = vld [vmem:[%s532 + $0xb4] sm:$0xff]
        %v622 = vld [vmem:[%s532 + $0xbc] sm:$0xf]
        %v623 = vld [vmem:[%s536] sm:$0x7]
        %v625 = vlaneseq
        %v626 = vshrl.u32 %v625, 7
        %v627 = vsub.s32 0, %v626
        %v628 = vrot.slane %v623, %v627
        %v629 = vlaneseq
        %v630 = vshrl.u32 %v629, 7
        %v631 = vsub.s32 1, %v630
        %v632 = vrot.slane %v623, %v631
        %v633 = vlaneseq
        %v634 = vshrl.u32 %v633, 7
        %v635 = vsub.s32 2, %v634
        %v636 = vrot.slane %v623, %v635
        %v672 = vunpack.c.l.b16 %v591
        %v673 = vunpack.c.h.b16 %v591
        %v674 = vunpack.c.l.b16 %v592
        %v675 = vunpack.c.l.b16 %v593
        %v676 = vunpack.c.h.b16 %v593
        %v677 = vunpack.c.l.b16 %v594
        %v678 = vunpack.c.l.b16 %v595
        %v679 = vunpack.c.h.b16 %v595
        %v680 = vunpack.c.l.b16 %v596
        %v681 = vunpack.c.l.b16 %v597
        %v682 = vunpack.c.h.b16 %v597
        %v683 = vunpack.c.l.b16 %v598
        %v684 = vunpack.c.l.b16 %v599
        %v685 = vunpack.c.h.b16 %v599
        %v686 = vunpack.c.l.b16 %v600
        %v687 = vunpack.c.l.b16 %v601
        %v688 = vunpack.c.h.b16 %v601
        %v689 = vunpack.c.l.b16 %v602
        %v690 = vunpack.c.l.b16 %v603
        %v691 = vunpack.c.h.b16 %v603
        %v692 = vunpack.c.l.b16 %v604
        %v693 = vunpack.c.l.b16 %v605
        %v694 = vunpack.c.h.b16 %v605
        %v695 = vunpack.c.l.b16 %v606
        %v696 = vunpack.c.l.b16 %v607
        %v697 = vunpack.c.h.b16 %v607
        %v698 = vunpack.c.l.b16 %v608
        %v699 = vunpack.c.l.b16 %v609
        %v700 = vunpack.c.h.b16 %v609
        %v701 = vunpack.c.l.b16 %v610
        %v702 = vunpack.c.l.b16 %v611
        %v703 = vunpack.c.h.b16 %v611
        %v704 = vunpack.c.l.b16 %v612
        %v705 = vunpack.c.l.b16 %v613
        %v706 = vunpack.c.h.b16 %v613
        %v707 = vunpack.c.l.b16 %v614
        %v708 = vunpack.c.l.b16 %v615
        %v709 = vunpack.c.h.b16 %v615
        %v710 = vunpack.c.l.b16 %v616
        %v711 = vunpack.c.l.b16 %v617
        %v712 = vunpack.c.h.b16 %v617
        %v713 = vunpack.c.l.b16 %v618
        %v714 = vunpack.c.l.b16 %v619
        %v715 = vunpack.c.h.b16 %v619
        %v716 = vunpack.c.l.b16 %v620
        %v717 = vunpack.c.l.b16 %v621
        %v718 = vunpack.c.h.b16 %v621
        %v719 = vunpack.c.l.b16 %v622
        %v720 = vpack.c.b16 %v675, %v672
        %v721 = vpack.c.b16 %v676, %v673
        %v722 = vpack.c.b16 %v677, %v674
        %v723 = vpack.c.b16 %v681, %v678
        %v724 = vpack.c.b16 %v682, %v679
        %v725 = vpack.c.b16 %v683, %v680
        %v726 = vpack.c.b16 %v687, %v684
        %v727 = vpack.c.b16 %v688, %v685
        %v728 = vpack.c.b16 %v689, %v686
        %v729 = vpack.c.b16 %v693, %v690
        %v730 = vpack.c.b16 %v694, %v691
        %v731 = vpack.c.b16 %v695, %v692
        %v732 = vpack.c.b16 %v699, %v696
        %v733 = vpack.c.b16 %v700, %v697
        %v734 = vpack.c.b16 %v701, %v698
        %v735 = vpack.c.b16 %v705, %v702
        %v736 = vpack.c.b16 %v706, %v703
        %v737 = vpack.c.b16 %v707, %v704
        %v738 = vpack.c.b16 %v711, %v708
        %v739 = vpack.c.b16 %v712, %v709
        %v740 = vpack.c.b16 %v713, %v710
        %v741 = vpack.c.b16 %v717, %v714
        %v742 = vpack.c.b16 %v718, %v715
        %v743 = vpack.c.b16 %v719, %v716
        %768 = vmatprep.subr.bf16.mxu0 %v721
        %769 = vmatpush1.bf16.msra.mxu0 %v720
        %770 = vmatprep.subr.bf16.mxu0 %v724
        %771 = vmatpush1.bf16.msra.mxu0 %v723
        %772 = vmatprep.subr.bf16.mxu0 %v727
        %773 = vmatpush1.bf16.msra.mxu0 %v726
        %774 = vmatprep.subr.bf16.mxu0 %v730
        %775 = vmatpush1.bf16.msra.mxu0 %v729
        %776 = vmatprep.subr.bf16.mxu0 %v733
        %777 = vmatpush1.bf16.msra.mxu0 %v732
        %778 = vmatprep.subr.bf16.mxu0 %v736
        %779 = vmatpush1.bf16.msra.mxu0 %v735
        %780 = vmatprep.subr.bf16.mxu0 %v739
        %781 = vmatpush1.bf16.msra.mxu0 %v738
        %782 = vmatprep.subr.bf16.mxu0 %v742
        %783 = vmatpush1.bf16.msra.mxu0 %v741
        %784 = vmatprep.subr.bf16.mxu0 0
        %785 = vmatpush1.bf16.msra.mxu0 0
        %786 = vmatprep.subr.bf16.mxu0 0
        %787 = vmatpush1.bf16.msra.mxu0 0
        %788 = vmatprep.subr.bf16.mxu0 0
        %789 = vmatpush1.bf16.msra.mxu0 0
        %790 = vmatprep.subr.bf16.mxu0 0
        %791 = vmatpush1.bf16.msra.mxu0 0
        %792 = vmatprep.subr.bf16.mxu0 0
        %793 = vmatpush1.bf16.msra.mxu0 0
        %794 = vmatprep.subr.bf16.mxu0 0
        %795 = vmatpush1.bf16.msra.mxu0 0
        %796 = vmatprep.subr.bf16.mxu0 0
        %797 = vmatpush1.bf16.msra.mxu0 0
        %798 = vmatprep.subr.bf16.mxu0 0
        %799 = vmatpush1.bf16.msra.mxu0 0
        %800 = vmatprep.mubr.bf16.mxu0 0
        %801 = vmatmul.mubr.bf16.gmra.mrb[0].mxu0 %v590
        %v802 = vpop.f32.mrb[0].mxu0
        %v803 = vadd.f32 %v628, %v802
        %v804 = vpop.f32.mrb[0].mxu0
        %v805 = vadd.f32 %v632, %v804
        %v806 = vpop.f32.mrb[0].mxu0
        %v807 = vpop.f32.mrb[0].mxu0
        %808 = vdwg.mxu0
        %809 = vmatprep.subr.bf16.mxu0 0
        %810 = vmatpush1.bf16.msra.mxu0 %v722
        %811 = vmatprep.subr.bf16.mxu0 0
        %812 = vmatpush1.bf16.msra.mxu0 %v725
        %813 = vmatprep.subr.bf16.mxu0 0
        %814 = vmatpush1.bf16.msra.mxu0 %v728
        %815 = vmatprep.subr.bf16.mxu0 0
        %816 = vmatpush1.bf16.msra.mxu0 %v731
        %817 = vmatprep.subr.bf16.mxu0 0
        %818 = vmatpush1.bf16.msra.mxu0 %v734
        %819 = vmatprep.subr.bf16.mxu0 0
        %820 = vmatpush1.bf16.msra.mxu0 %v737
        %821 = vmatprep.subr.bf16.mxu0 0
        %822 = vmatpush1.bf16.msra.mxu0 %v740
        %823 = vmatprep.subr.bf16.mxu0 0
        %824 = vmatpush1.bf16.msra.mxu0 %v743
        %825 = vmatprep.subr.bf16.mxu0 0
        %826 = vmatpush1.bf16.msra.mxu0 0
        %827 = vmatprep.subr.bf16.mxu0 0
        %828 = vmatpush1.bf16.msra.mxu0 0
        %829 = vmatprep.subr.bf16.mxu0 0
        %830 = vmatpush1.bf16.msra.mxu0 0
        %831 = vmatprep.subr.bf16.mxu0 0
        %832 = vmatpush1.bf16.msra.mxu0 0
        %833 = vmatprep.subr.bf16.mxu0 0
        %834 = vmatpush1.bf16.msra.mxu0 0
        %835 = vmatprep.subr.bf16.mxu0 0
        %836 = vmatpush1.bf16.msra.mxu0 0
        %837 = vmatprep.subr.bf16.mxu0 0
        %838 = vmatpush1.bf16.msra.mxu0 0
        %839 = vmatprep.subr.bf16.mxu0 0
        %840 = vmatpush1.bf16.msra.mxu0 0
        %841 = vmatprep.mubr.bf16.mxu0 0
        %842 = vmatmul.mubr.bf16.gmra.mrb[0].mxu0 %v590
        %v843 = vpop.f32.mrb[0].mxu0
        %v844 = vadd.f32 %v636, %v843
        %v845 = vpop.f32.mrb[0].mxu0
        %v846 = vpop.f32.mrb[0].mxu0
        %v847 = vpop.f32.mrb[0].mxu0
        %848 = vdwg.mxu0
        %v849 = vpack.c.bf16 %v803, %v803
        %v850 = vpack.c.bf16 %v805, %v805
        %v851 = vpack.c.bf16 %v844, %v844
        %vm852 = vcmask 261120
        %v854 = vsel %vm852, %v849, 0
        %v857 = vsel %vm852, %v850, 0
        %859 = vmatprep.subr.bf16.mxu0 0
        %860 = vmatpush1.bf16.xpose.msra.mxu0 %v857
        %861 = vmatprep.subr.bf16.mxu0 0
        %862 = vmatpush1.bf16.xpose.msra.mxu0 0
        %863 = vmatprep.subr.bf16.mxu0 0
        %864 = vmatpush1.bf16.xpose.msra.mxu0 0
        %865 = vmatprep.subr.bf16.mxu0 0
        %866 = vmatpush1.bf16.xpose.msra.mxu0 0
        %867 = vmatprep.subr.bf16.mxu0 0
        %868 = vmatpush1.bf16.xpose.msra.mxu0 0
        %869 = vmatprep.subr.bf16.mxu0 0
        %870 = vmatpush1.bf16.xpose.msra.mxu0 0
        %871 = vmatprep.subr.bf16.mxu0 0
        %872 = vmatpush1.bf16.xpose.msra.mxu0 0
        %873 = vmatprep.subr.bf16.mxu0 0
        %874 = vmatpush1.bf16.xpose.msra.mxu0 0
        %875 = vmatprep.subr.bf16.mxu0 0
        %876 = vmatpush1.bf16.xpose.msra.mxu0 0
        %877 = vmatprep.subr.bf16.mxu0 0
        %878 = vmatpush1.bf16.xpose.msra.mxu0 0
        %879 = vmatprep.subr.bf16.mxu0 0
        %880 = vmatpush1.bf16.xpose.msra.mxu0 0
        %881 = vmatprep.subr.bf16.mxu0 0
        %882 = vmatpush1.bf16.xpose.msra.mxu0 0
        %883 = vmatprep.subr.bf16.mxu0 0
        %884 = vmatpush1.bf16.xpose.msra.mxu0 0
        %885 = vmatprep.subr.bf16.mxu0 0
        %886 = vmatpush1.bf16.xpose.msra.mxu0 0
        %887 = vmatprep.subr.bf16.mxu0 0
        %888 = vmatpush1.bf16.xpose.msra.mxu0 0
        %889 = vmatprep.subr.bf16.mxu0 0
        %890 = vmatpush1.bf16.xpose.msra.mxu0 0
        %891 = vmatprep.mubr.bf16.mxu0 0
        %892 = vmatmul.mubr.bf16.gmra.mrb[0].mxu0 %v854
        %v893 = vpop.f32.mrb[0].mxu0
        %v894 = vadd.f32 0.0, %v893
        %v895 = vpop.f32.mrb[0].mxu0
        %v896 = vpop.f32.mrb[0].mxu0
        %v897 = vpop.f32.mrb[0].mxu0
        %898 = vdwg.mxu0
        %vm899 = vcmask 64512
        %v900 = vsel %vm899, %v894, -inf
        %901 = vmax.xlane.f32.xlu0 %v900
        %v902 = vpop.xlane.xlu0 %901
        %v903 = vsub.f32 %v894, %v902
        %v904 = vmul.f32 %v903, 1.442695
        %v905 = vpow.pop %v904
        %v906 = vsel %vm899, %v905, 0.0
        %907 = vadd.xlane.f32.xlu0 %v906
        %v908 = vpop.xlane.xlu0 %907
        %v909 = vrcp.pop %v908
        %v910 = vmul.f32 %v908, %v909
        %v911 = vsub.f32 2.0, %v910
        %v912 = vmul.f32 %v909, %v911
        %v913 = vmul.f32 %v905, %v912
        %v914 = vpack.c.bf16 %v913, %v913
        %v916 = vsel %vm899, %v914, 0
        %vm918 = vcmask 1043456
        %v920 = vsel %vm918, %v851, 0
        %922 = vmatprep.subr.bf16.mxu0 0
        %923 = vmatpush1.bf16.msra.mxu0 %v920
        %924 = vmatprep.subr.bf16.mxu0 0
        %925 = vmatpush1.bf16.msra.mxu0 0
        %926 = vmatprep.subr.bf16.mxu0 0
        %927 = vmatpush1.bf16.msra.mxu0 0
        %928 = vmatprep.subr.bf16.mxu0 0
        %929 = vmatpush1.bf16.msra.mxu0 0
        %930 = vmatprep.subr.bf16.mxu0 0
        %931 = vmatpush1.bf16.msra.mxu0 0
        %932 = vmatprep.subr.bf16.mxu0 0
        %933 = vmatpush1.bf16.msra.mxu0 0
        %934 = vmatprep.subr.bf16.mxu0 0
        %935 = vmatpush1.bf16.msra.mxu0 0
        %936 = vmatprep.subr.bf16.mxu0 0
        %937 = vmatpush1.bf16.msra.mxu0 0
        %938 = vmatprep.subr.bf16.mxu0 0
        %939 = vmatpush1.bf16.msra.mxu0 0
        %940 = vmatprep.subr.bf16.mxu0 0
        %941 = vmatpush1.bf16.msra.mxu0 0
        %942 = vmatprep.subr.bf16.mxu0 0
        %943 = vmatpush1.bf16.msra.mxu0 0
        %944 = vmatprep.subr.bf16.mxu0 0
        %945 = vmatpush1.bf16.msra.mxu0 0
        %946 = vmatprep.subr.bf16.mxu0 0
        %947 = vmatpush1.bf16.msra.mxu0 0
        %948 = vmatprep.subr.bf16.mxu0 0
        %949 = vmatpush1.bf16.msra.mxu0 0
        %950 = vmatprep.subr.bf16.mxu0 0
        %951 = vmatpush1.bf16.msra.mxu0 0
        %952 = vmatprep.subr.bf16.mxu0 0
        %953 = vmatpush1.bf16.msra.mxu0 0
        %954 = vmatprep.mubr.bf16.mxu0 0
        %955 = vmatmul.mubr.bf16.gmra.mrb[0].mxu0 %v916
        %v956 = vpop.f32.mrb[0].mxu0
        %v957 = vadd.f32 0.0, %v956
        %v958 = vpop.f32.mrb[0].mxu0
        %v959 = vpop.f32.mrb[0].mxu0
        %v960 = vpop.f32.mrb[0].mxu0
        %961 = vdwg.mxu0
        %963 = vrot.lane.b32.xlu0 %v849, 96
        %v964 = vpop.permute.xlu0 %963
        %966 = vrot.lane.b32.xlu0 %v850, 96
        %v967 = vpop.permute.xlu0 %966
        %v969 = vsel %vm852, %v964, 0
        %v972 = vsel %vm852, %v967, 0
        %974 = vmatprep.subr.bf16.mxu0 0
        %975 = vmatpush1.bf16.xpose.msra.mxu0 %v972
        %976 = vmatprep.subr.bf16.mxu0 0
        %977 = vmatpush1.bf16.xpose.msra.mxu0 0
        %978 = vmatprep.subr.bf16.mxu0 0
        %979 = vmatpush1.bf16.xpose.msra.mxu0 0
        %980 = vmatprep.subr.bf16.mxu0 0
        %981 = vmatpush1.bf16.xpose.msra.mxu0 0
        %982 = vmatprep.subr.bf16.mxu0 0
        %983 = vmatpush1.bf16.xpose.msra.mxu0 0
        %984 = vmatprep.subr.bf16.mxu0 0
        %985 = vmatpush1.bf16.xpose.msra.mxu0 0
        %986 = vmatprep.subr.bf16.mxu0 0
        %987 = vmatpush1.bf16.xpose.msra.mxu0 0
        %988 = vmatprep.subr.bf16.mxu0 0
        %989 = vmatpush1.bf16.xpose.msra.mxu0 0
        %990 = vmatprep.subr.bf16.mxu0 0
        %991 = vmatpush1.bf16.xpose.msra.mxu0 0
        %992 = vmatprep.subr.bf16.mxu0 0
        %993 = vmatpush1.bf16.xpose.msra.mxu0 0
        %994 = vmatprep.subr.bf16.mxu0 0
        %995 = vmatpush1.bf16.xpose.msra.mxu0 0
        %996 = vmatprep.subr.bf16.mxu0 0
        %997 = vmatpush1.bf16.xpose.msra.mxu0 0
        %998 = vmatprep.subr.bf16.mxu0 0
        %999 = vmatpush1.bf16.xpose.msra.mxu0 0
        %1000 = vmatprep.subr.bf16.mxu0 0
        %1001 = vmatpush1.bf16.xpose.msra.mxu0 0
        %1002 = vmatprep.subr.bf16.mxu0 0
        %1003 = vmatpush1.bf16.xpose.msra.mxu0 0
        %1004 = vmatprep.subr.bf16.mxu0 0
        %1005 = vmatpush1.bf16.xpose.msra.mxu0 0
        %1006 = vmatprep.mubr.bf16.mxu0 0
        %1007 = vmatmul.mubr.bf16.gmra.mrb[0].mxu0 %v969
        %v1008 = vpop.f32.mrb[0].mxu0
        %v1009 = vadd.f32 0.0, %v1008
        %v1010 = vpop.f32.mrb[0].mxu0
        %v1011 = vpop.f32.mrb[0].mxu0
        %v1012 = vpop.f32.mrb[0].mxu0
        %1013 = vdwg.mxu0
        %v1014 = vsel %vm899, %v1009, -inf
        %1015 = vmax.xlane.f32.xlu0 %v1014
        %v1016 = vpop.xlane.xlu0 %1015
        %v1017 = vsub.f32 %v1009, %v1016
        %v1018 = vmul.f32 %v1017, 1.442695
        %v1019 = vpow.pop %v1018
        %v1020 = vsel %vm899, %v1019, 0.0
        %1021 = vadd.xlane.f32.xlu0 %v1020
        %v1022 = vpop.xlane.xlu0 %1021
        %v1023 = vrcp.pop %v1022
        %v1024 = vmul.f32 %v1022, %v1023
        %v1025 = vsub.f32 2.0, %v1024
        %v1026 = vmul.f32 %v1023, %v1025
        %v1027 = vmul.f32 %v1019, %v1026
        %v1028 = vpack.c.bf16 %v1027, %v1027
        %1030 = vrot.lane.b32.xlu0 %v851, 96
        %v1031 = vpop.permute.xlu0 %1030
        %v1033 = vsel %vm899, %v1028, 0
        %v1036 = vsel %vm918, %v1031, 0
        %1038 = vmatprep.subr.bf16.mxu0 0
        %1039 = vmatpush1.bf16.msra.mxu0 %v1036
        %1040 = vmatprep.subr.bf16.mxu0 0
        %1041 = vmatpush1.bf16.msra.mxu0 0
        %1042 = vmatprep.subr.bf16.mxu0 0
        %1043 = vmatpush1.bf16.msra.mxu0 0
        %1044 = vmatprep.subr.bf16.mxu0 0
        %1045 = vmatpush1.bf16.msra.mxu0 0
        %1046 = vmatprep.subr.bf16.mxu0 0
        %1047 = vmatpush1.bf16.msra.mxu0 0
        %1048 = vmatprep.subr.bf16.mxu0 0
        %1049 = vmatpush1.bf16.msra.mxu0 0
        %1050 = vmatprep.subr.bf16.mxu0 0
        %1051 = vmatpush1.bf16.msra.mxu0 0
        %1052 = vmatprep.subr.bf16.mxu0 0
        %1053 = vmatpush1.bf16.msra.mxu0 0
        %1054 = vmatprep.subr.bf16.mxu0 0
        %1055 = vmatpush1.bf16.msra.mxu0 0
        %1056 = vmatprep.subr.bf16.mxu0 0
        %1057 = vmatpush1.bf16.msra.mxu0 0
        %1058 = vmatprep.subr.bf16.mxu0 0
        %1059 = vmatpush1.bf16.msra.mxu0 0
        %1060 = vmatprep.subr.bf16.mxu0 0
        %1061 = vmatpush1.bf16.msra.mxu0 0
        %1062 = vmatprep.subr.bf16.mxu0 0
        %1063 = vmatpush1.bf16.msra.mxu0 0
        %1064 = vmatprep.subr.bf16.mxu0 0
        %1065 = vmatpush1.bf16.msra.mxu0 0
        %1066 = vmatprep.subr.bf16.mxu0 0
        %1067 = vmatpush1.bf16.msra.mxu0 0
        %1068 = vmatprep.subr.bf16.mxu0 0
        %1069 = vmatpush1.bf16.msra.mxu0 0
        %1070 = vmatprep.mubr.bf16.mxu0 0
        %1071 = vmatmul.mubr.bf16.gmra.mrb[0].mxu0 %v1033
        %v1072 = vpop.f32.mrb[0].mxu0
        %v1073 = vadd.f32 0.0, %v1072
        %v1074 = vpop.f32.mrb[0].mxu0
        %v1075 = vpop.f32.mrb[0].mxu0
        %v1076 = vpop.f32.mrb[0].mxu0
        %1077 = vdwg.mxu0
        %1078 = vrot.lane.b32.xlu0 %v849, 64
        %v1079 = vpop.permute.xlu0 %1078
        %1080 = vrot.lane.b32.xlu0 %v850, 64
        %v1081 = vpop.permute.xlu0 %1080
        %v1083 = vsel %vm852, %v1079, 0
        %v1086 = vsel %vm852, %v1081, 0
        %1088 = vmatprep.subr.bf16.mxu0 0
        %1089 = vmatpush1.bf16.xpose.msra.mxu0 %v1086
        %1090 = vmatprep.subr.bf16.mxu0 0
        %1091 = vmatpush1.bf16.xpose.msra.mxu0 0
        %1092 = vmatprep.subr.bf16.mxu0 0
        %1093 = vmatpush1.bf16.xpose.msra.mxu0 0
        %1094 = vmatprep.subr.bf16.mxu0 0
        %1095 = vmatpush1.bf16.xpose.msra.mxu0 0
        %1096 = vmatprep.subr.bf16.mxu0 0
        %1097 = vmatpush1.bf16.xpose.msra.mxu0 0
        %1098 = vmatprep.subr.bf16.mxu0 0
        %1099 = vmatpush1.bf16.xpose.msra.mxu0 0
        %1100 = vmatprep.subr.bf16.mxu0 0
        %1101 = vmatpush1.bf16.xpose.msra.mxu0 0
        %1102 = vmatprep.subr.bf16.mxu0 0
        %1103 = vmatpush1.bf16.xpose.msra.mxu0 0
        %1104 = vmatprep.subr.bf16.mxu0 0
        %1105 = vmatpush1.bf16.xpose.msra.mxu0 0
        %1106 = vmatprep.subr.bf16.mxu0 0
        %1107 = vmatpush1.bf16.xpose.msra.mxu0 0
        %1108 = vmatprep.subr.bf16.mxu0 0
        %1109 = vmatpush1.bf16.xpose.msra.mxu0 0
        %1110 = vmatprep.subr.bf16.mxu0 0
        %1111 = vmatpush1.bf16.xpose.msra.mxu0 0
        %1112 = vmatprep.subr.bf16.mxu0 0
        %1113 = vmatpush1.bf16.xpose.msra.mxu0 0
        %1114 = vmatprep.subr.bf16.mxu0 0
        %1115 = vmatpush1.bf16.xpose.msra.mxu0 0
        %1116 = vmatprep.subr.bf16.mxu0 0
        %1117 = vmatpush1.bf16.xpose.msra.mxu0 0
        %1118 = vmatprep.subr.bf16.mxu0 0
        %1119 = vmatpush1.bf16.xpose.msra.mxu0 0
        %1120 = vmatprep.mubr.bf16.mxu0 0
        %1121 = vmatmul.mubr.bf16.gmra.mrb[0].mxu0 %v1083
        %v1122 = vpop.f32.mrb[0].mxu0
        %v1123 = vadd.f32 0.0, %v1122
        %v1124 = vpop.f32.mrb[0].mxu0
        %v1125 = vpop.f32.mrb[0].mxu0
        %v1126 = vpop.f32.mrb[0].mxu0
        %1127 = vdwg.mxu0
        %v1128 = vsel %vm899, %v1123, -inf
        %1129 = vmax.xlane.f32.xlu0 %v1128
        %v1130 = vpop.xlane.xlu0 %1129
        %v1131 = vsub.f32 %v1123, %v1130
        %v1132 = vmul.f32 %v1131, 1.442695
        %v1133 = vpow.pop %v1132
        %v1134 = vsel %vm899, %v1133, 0.0
        %1135 = vadd.xlane.f32.xlu0 %v1134
        %v1136 = vpop.xlane.xlu0 %1135
        %v1137 = vrcp.pop %v1136
        %v1138 = vmul.f32 %v1136, %v1137
        %v1139 = vsub.f32 2.0, %v1138
        %v1140 = vmul.f32 %v1137, %v1139
        %v1141 = vmul.f32 %v1133, %v1140
        %v1142 = vpack.c.bf16 %v1141, %v1141
        %1143 = vrot.lane.b32.xlu0 %v851, 64
        %v1144 = vpop.permute.xlu0 %1143
        %v1146 = vsel %vm899, %v1142, 0
        %v1149 = vsel %vm918, %v1144, 0
        %1151 = vmatprep.subr.bf16.mxu0 0
        %1152 = vmatpush1.bf16.msra.mxu0 %v1149
        %1153 = vmatprep.subr.bf16.mxu0 0
        %1154 = vmatpush1.bf16.msra.mxu0 0
        %1155 = vmatprep.subr.bf16.mxu0 0
        %1156 = vmatpush1.bf16.msra.mxu0 0
        %1157 = vmatprep.subr.bf16.mxu0 0
        %1158 = vmatpush1.bf16.msra.mxu0 0
        %1159 = vmatprep.subr.bf16.mxu0 0
        %1160 = vmatpush1.bf16.msra.mxu0 0
        %1161 = vmatprep.subr.bf16.mxu0 0
        %1162 = vmatpush1.bf16.msra.mxu0 0
        %1163 = vmatprep.subr.bf16.mxu0 0
        %1164 = vmatpush1.bf16.msra.mxu0 0
        %1165 = vmatprep.subr.bf16.mxu0 0
        %1166 = vmatpush1.bf16.msra.mxu0 0
        %1167 = vmatprep.subr.bf16.mxu0 0
        %1168 = vmatpush1.bf16.msra.mxu0 0
        %1169 = vmatprep.subr.bf16.mxu0 0
        %1170 = vmatpush1.bf16.msra.mxu0 0
        %1171 = vmatprep.subr.bf16.mxu0 0
        %1172 = vmatpush1.bf16.msra.mxu0 0
        %1173 = vmatprep.subr.bf16.mxu0 0
        %1174 = vmatpush1.bf16.msra.mxu0 0
        %1175 = vmatprep.subr.bf16.mxu0 0
        %1176 = vmatpush1.bf16.msra.mxu0 0
        %1177 = vmatprep.subr.bf16.mxu0 0
        %1178 = vmatpush1.bf16.msra.mxu0 0
        %1179 = vmatprep.subr.bf16.mxu0 0
        %1180 = vmatpush1.bf16.msra.mxu0 0
        %1181 = vmatprep.subr.bf16.mxu0 0
        %1182 = vmatpush1.bf16.msra.mxu0 0
        %1183 = vmatprep.mubr.bf16.mxu0 0
        %1184 = vmatmul.mubr.bf16.gmra.mrb[0].mxu0 %v1146
        %v1185 = vpop.f32.mrb[0].mxu0
        %v1186 = vadd.f32 0.0, %v1185
        %v1187 = vpop.f32.mrb[0].mxu0
        %v1188 = vpop.f32.mrb[0].mxu0
        %v1189 = vpop.f32.mrb[0].mxu0
        %1190 = vdwg.mxu0
        %1191 = vrot.lane.b32.xlu0 %v849, 32
        %v1192 = vpop.permute.xlu0 %1191
        %1193 = vrot.lane.b32.xlu0 %v850, 32
        %v1194 = vpop.permute.xlu0 %1193
        %v1196 = vsel %vm852, %v1192, 0
        %v1199 = vsel %vm852, %v1194, 0
        %1201 = vmatprep.subr.bf16.mxu0 0
        %1202 = vmatpush1.bf16.xpose.msra.mxu0 %v1199
        %1203 = vmatprep.subr.bf16.mxu0 0
        %1204 = vmatpush1.bf16.xpose.msra.mxu0 0
        %1205 = vmatprep.subr.bf16.mxu0 0
        %1206 = vmatpush1.bf16.xpose.msra.mxu0 0
        %1207 = vmatprep.subr.bf16.mxu0 0
        %1208 = vmatpush1.bf16.xpose.msra.mxu0 0
        %1209 = vmatprep.subr.bf16.mxu0 0
        %1210 = vmatpush1.bf16.xpose.msra.mxu0 0
        %1211 = vmatprep.subr.bf16.mxu0 0
        %1212 = vmatpush1.bf16.xpose.msra.mxu0 0
        %1213 = vmatprep.subr.bf16.mxu0 0
        %1214 = vmatpush1.bf16.xpose.msra.mxu0 0
        %1215 = vmatprep.subr.bf16.mxu0 0
        %1216 = vmatpush1.bf16.xpose.msra.mxu0 0
        %1217 = vmatprep.subr.bf16.mxu0 0
        %1218 = vmatpush1.bf16.xpose.msra.mxu0 0
        %1219 = vmatprep.subr.bf16.mxu0 0
        %1220 = vmatpush1.bf16.xpose.msra.mxu0 0
        %1221 = vmatprep.subr.bf16.mxu0 0
        %1222 = vmatpush1.bf16.xpose.msra.mxu0 0
        %1223 = vmatprep.subr.bf16.mxu0 0
        %1224 = vmatpush1.bf16.xpose.msra.mxu0 0
        %1225 = vmatprep.subr.bf16.mxu0 0
        %1226 = vmatpush1.bf16.xpose.msra.mxu0 0
        %1227 = vmatprep.subr.bf16.mxu0 0
        %1228 = vmatpush1.bf16.xpose.msra.mxu0 0
        %1229 = vmatprep.subr.bf16.mxu0 0
        %1230 = vmatpush1.bf16.xpose.msra.mxu0 0
        %1231 = vmatprep.subr.bf16.mxu0 0
        %1232 = vmatpush1.bf16.xpose.msra.mxu0 0
        %1233 = vmatprep.mubr.bf16.mxu0 0
        %1234 = vmatmul.mubr.bf16.gmra.mrb[0].mxu0 %v1196
        %v1235 = vpop.f32.mrb[0].mxu0
        %v1236 = vadd.f32 0.0, %v1235
        %v1237 = vpop.f32.mrb[0].mxu0
        %v1238 = vpop.f32.mrb[0].mxu0
        %v1239 = vpop.f32.mrb[0].mxu0
        %1240 = vdwg.mxu0
        %v1241 = vsel %vm899, %v1236, -inf
        %1242 = vmax.xlane.f32.xlu0 %v1241
        %v1243 = vpop.xlane.xlu0 %1242
        %v1244 = vsub.f32 %v1236, %v1243
        %v1245 = vmul.f32 %v1244, 1.442695
        %v1246 = vpow.pop %v1245
        %v1247 = vsel %vm899, %v1246, 0.0
        %1248 = vadd.xlane.f32.xlu0 %v1247
        %v1249 = vpop.xlane.xlu0 %1248
        %v1250 = vrcp.pop %v1249
        %v1251 = vmul.f32 %v1249, %v1250
        %v1252 = vsub.f32 2.0, %v1251
        %v1253 = vmul.f32 %v1250, %v1252
        %v1254 = vmul.f32 %v1246, %v1253
        %v1255 = vpack.c.bf16 %v1254, %v1254
        %1256 = vrot.lane.b32.xlu0 %v851, 32
        %v1257 = vpop.permute.xlu0 %1256
        %v1259 = vsel %vm899, %v1255, 0
        %v1262 = vsel %vm918, %v1257, 0
        %1264 = vmatprep.subr.bf16.mxu0 0
        %1265 = vmatpush1.bf16.msra.mxu0 %v1262
        %1266 = vmatprep.subr.bf16.mxu0 0
        %1267 = vmatpush1.bf16.msra.mxu0 0
        %1268 = vmatprep.subr.bf16.mxu0 0
        %1269 = vmatpush1.bf16.msra.mxu0 0
        %1270 = vmatprep.subr.bf16.mxu0 0
        %1271 = vmatpush1.bf16.msra.mxu0 0
        %1272 = vmatprep.subr.bf16.mxu0 0
        %1273 = vmatpush1.bf16.msra.mxu0 0
        %1274 = vmatprep.subr.bf16.mxu0 0
        %1275 = vmatpush1.bf16.msra.mxu0 0
        %1276 = vmatprep.subr.bf16.mxu0 0
        %1277 = vmatpush1.bf16.msra.mxu0 0
        %1278 = vmatprep.subr.bf16.mxu0 0
        %1279 = vmatpush1.bf16.msra.mxu0 0
        %1280 = vmatprep.subr.bf16.mxu0 0
        %1281 = vmatpush1.bf16.msra.mxu0 0
        %1282 = vmatprep.subr.bf16.mxu0 0
        %1283 = vmatpush1.bf16.msra.mxu0 0
        %1284 = vmatprep.subr.bf16.mxu0 0
        %1285 = vmatpush1.bf16.msra.mxu0 0
        %1286 = vmatprep.subr.bf16.mxu0 0
        %1287 = vmatpush1.bf16.msra.mxu0 0
        %1288 = vmatprep.subr.bf16.mxu0 0
        %1289 = vmatpush1.bf16.msra.mxu0 0
        %1290 = vmatprep.subr.bf16.mxu0 0
        %1291 = vmatpush1.bf16.msra.mxu0 0
        %1292 = vmatprep.subr.bf16.mxu0 0
        %1293 = vmatpush1.bf16.msra.mxu0 0
        %1294 = vmatprep.subr.bf16.mxu0 0
        %1295 = vmatpush1.bf16.msra.mxu0 0
        %1296 = vmatprep.mubr.bf16.mxu0 0
        %1297 = vmatmul.mubr.bf16.gmra.mrb[0].mxu0 %v1259
        %v1298 = vpop.f32.mrb[0].mxu0
        %v1299 = vadd.f32 0.0, %v1298
        %v1300 = vpop.f32.mrb[0].mxu0
        %v1301 = vpop.f32.mrb[0].mxu0
        %v1302 = vpop.f32.mrb[0].mxu0
        %1303 = vdwg.mxu0
        %1305 = vrot.lane.b32.xlu0 %v1073, 32
        %v1306 = vpop.permute.xlu0 %1305
        %1309 = vrot.lane.b32.xlu0 %v1186, 64
        %v1310 = vpop.permute.xlu0 %1309
        %1313 = vrot.lane.b32.xlu0 %v1299, 96
        %v1314 = vpop.permute.xlu0 %1313
        %v1316 = vsel %vm852, %v957, %v1306
        %vm1317 = vcmask 523264
        %v1318 = vsel %vm1317, %v1316, %v1310
        %vm1319 = vcmask 785408
        %v1320 = vsel %vm1319, %v1318, %v1314
        %v1321 = vpack.c.bf16 %v1320, %v1320
        %v1322 = vld [vmem:[%s541] sm:$0xf]
        %v1323 = vld [vmem:[%s541 + $0x4] sm:$0xf]
        %v1324 = vld [vmem:[%s541 + $0x8] sm:$0xf]
        %v1325 = vld [vmem:[%s541 + $0xc] sm:$0xf]
        %v1326 = vld [vmem:[%s541 + $0x10] sm:$0xf]
        %v1327 = vld [vmem:[%s541 + $0x14] sm:$0xf]
        %v1328 = vld [vmem:[%s541 + $0x18] sm:$0xf]
        %v1329 = vld [vmem:[%s541 + $0x1c] sm:$0xf]
        %v1330 = vld [vmem:[%s541 + $0x20] sm:$0xf]
        %v1331 = vld [vmem:[%s541 + $0x24] sm:$0xf]
        %v1332 = vld [vmem:[%s541 + $0x28] sm:$0xf]
        %v1333 = vld [vmem:[%s541 + $0x2c] sm:$0xf]
        %v1334 = vld [vmem:[%s541 + $0x30] sm:$0xf]
        %v1335 = vld [vmem:[%s541 + $0x34] sm:$0xf]
        %v1336 = vld [vmem:[%s541 + $0x38] sm:$0xf]
        %v1337 = vld [vmem:[%s541 + $0x3c] sm:$0xf]
        %v1354 = vunpack.c.l.b16 %v1322
        %v1355 = vunpack.c.l.b16 %v1323
        %v1356 = vunpack.c.l.b16 %v1324
        %v1357 = vunpack.c.l.b16 %v1325
        %v1358 = vunpack.c.l.b16 %v1326
        %v1359 = vunpack.c.l.b16 %v1327
        %v1360 = vunpack.c.l.b16 %v1328
        %v1361 = vunpack.c.l.b16 %v1329
        %v1362 = vunpack.c.l.b16 %v1330
        %v1363 = vunpack.c.l.b16 %v1331
        %v1364 = vunpack.c.l.b16 %v1332
        %v1365 = vunpack.c.l.b16 %v1333
        %v1366 = vunpack.c.l.b16 %v1334
        %v1367 = vunpack.c.l.b16 %v1335
        %v1368 = vunpack.c.l.b16 %v1336
        %v1369 = vunpack.c.l.b16 %v1337
        %v1370 = vpack.c.b16 %v1355, %v1354
        %v1371 = vpack.c.b16 %v1357, %v1356
        %v1372 = vpack.c.b16 %v1359, %v1358
        %v1373 = vpack.c.b16 %v1361, %v1360
        %v1374 = vpack.c.b16 %v1363, %v1362
        %v1375 = vpack.c.b16 %v1365, %v1364
        %v1376 = vpack.c.b16 %v1367, %v1366
        %v1377 = vpack.c.b16 %v1369, %v1368
        %1386 = vmatprep.subr.bf16.mxu0 0
        %1387 = vmatpush1.bf16.msra.mxu0 %v1370
        %1388 = vmatprep.subr.bf16.mxu0 0
        %1389 = vmatpush1.bf16.msra.mxu0 %v1371
        %1390 = vmatprep.subr.bf16.mxu0 0
        %1391 = vmatpush1.bf16.msra.mxu0 %v1372
        %1392 = vmatprep.subr.bf16.mxu0 0
        %1393 = vmatpush1.bf16.msra.mxu0 %v1373
        %1394 = vmatprep.subr.bf16.mxu0 0
        %1395 = vmatpush1.bf16.msra.mxu0 %v1374
        %1396 = vmatprep.subr.bf16.mxu0 0
        %1397 = vmatpush1.bf16.msra.mxu0 %v1375
        %1398 = vmatprep.subr.bf16.mxu0 0
        %1399 = vmatpush1.bf16.msra.mxu0 %v1376
        %1400 = vmatprep.subr.bf16.mxu0 0
        %1401 = vmatpush1.bf16.msra.mxu0 %v1377
        %1402 = vmatprep.subr.bf16.mxu0 0
        %1403 = vmatpush1.bf16.msra.mxu0 0
        %1404 = vmatprep.subr.bf16.mxu0 0
        %1405 = vmatpush1.bf16.msra.mxu0 0
        %1406 = vmatprep.subr.bf16.mxu0 0
        %1407 = vmatpush1.bf16.msra.mxu0 0
        %1408 = vmatprep.subr.bf16.mxu0 0
        %1409 = vmatpush1.bf16.msra.mxu0 0
        %1410 = vmatprep.subr.bf16.mxu0 0
        %1411 = vmatpush1.bf16.msra.mxu0 0
        %1412 = vmatprep.subr.bf16.mxu0 0
        %1413 = vmatpush1.bf16.msra.mxu0 0
        %1414 = vmatprep.subr.bf16.mxu0 0
        %1415 = vmatpush1.bf16.msra.mxu0 0
        %1416 = vmatprep.subr.bf16.mxu0 0
        %1417 = vmatpush1.bf16.msra.mxu0 0
        %1418 = vmatprep.mubr.bf16.mxu0 0
        %1419 = vmatmul.mubr.bf16.gmra.mrb[0].mxu0 %v1321
        %v1420 = vpop.f32.mrb[0].mxu0
        %v1421 = vadd.f32 0.0, %v1420
        %v1422 = vpop.f32.mrb[0].mxu0
        %v1423 = vpop.f32.mrb[0].mxu0
        %v1424 = vpop.f32.mrb[0].mxu0
        %1425 = vdwg.mxu0
        %v1426 = vadd.f32 %v577, %v1421
        %v1427 = vld [vmem:[%s544] sm:$0x1]
        %v1429 = vlaneseq
        %v1430 = vshrl.u32 %v1429, 7
        %v1431 = vsub.s32 0, %v1430
        %v1432 = vrot.slane %v1427, %v1431
        %v1434 = vadd.f32 %v1426, %v1432
        %1435 = vadd.xlane.f32.xlu0 %v1434
        %v1436 = vpop.xlane.xlu0 %1435
        %v1437 = vmul.f32 %v1436, %v580
        %v1438 = vsub.f32 %v1434, %v1437
        %v1439 = vmul.f32 %v1438, %v1438
        %1440 = vadd.xlane.f32.xlu0 %v1439
        %v1441 = vpop.xlane.xlu0 %1440
        %v1442 = vmul.f32 %v1441, %v580
        %v1443 = vadd.f32 %v1442, 1e-05
        %v1444 = vrsqrt.pop %v1443
        %v1445 = vmul.f32 %v1438, %v1444
        %v1446 = vpack.c.bf16 %v1445, %v1445
        %v1447 = vld [vmem:[%s549] sm:$0xf]
        %v1448 = vld [vmem:[%s549 + $0x4] sm:$0xf]
        %v1449 = vld [vmem:[%s549 + $0x8] sm:$0xf]
        %v1450 = vld [vmem:[%s549 + $0xc] sm:$0xf]
        %v1451 = vld [vmem:[%s549 + $0x10] sm:$0xf]
        %v1452 = vld [vmem:[%s549 + $0x14] sm:$0xf]
        %v1453 = vld [vmem:[%s549 + $0x18] sm:$0xf]
        %v1454 = vld [vmem:[%s549 + $0x1c] sm:$0xf]
        %v1455 = vld [vmem:[%s549 + $0x20] sm:$0xf]
        %v1456 = vld [vmem:[%s549 + $0x24] sm:$0xf]
        %v1457 = vld [vmem:[%s549 + $0x28] sm:$0xf]
        %v1458 = vld [vmem:[%s549 + $0x2c] sm:$0xf]
        %v1459 = vld [vmem:[%s549 + $0x30] sm:$0xf]
        %v1460 = vld [vmem:[%s549 + $0x34] sm:$0xf]
        %v1461 = vld [vmem:[%s549 + $0x38] sm:$0xf]
        %v1462 = vld [vmem:[%s549 + $0x3c] sm:$0xf]
        %v1479 = vunpack.c.l.b16 %v1447
        %v1480 = vunpack.c.l.b16 %v1448
        %v1481 = vunpack.c.l.b16 %v1449
        %v1482 = vunpack.c.l.b16 %v1450
        %v1483 = vunpack.c.l.b16 %v1451
        %v1484 = vunpack.c.l.b16 %v1452
        %v1485 = vunpack.c.l.b16 %v1453
        %v1486 = vunpack.c.l.b16 %v1454
        %v1487 = vunpack.c.l.b16 %v1455
        %v1488 = vunpack.c.l.b16 %v1456
        %v1489 = vunpack.c.l.b16 %v1457
        %v1490 = vunpack.c.l.b16 %v1458
        %v1491 = vunpack.c.l.b16 %v1459
        %v1492 = vunpack.c.l.b16 %v1460
        %v1493 = vunpack.c.l.b16 %v1461
        %v1494 = vunpack.c.l.b16 %v1462
        %v1495 = vpack.c.b16 %v1480, %v1479
        %v1496 = vpack.c.b16 %v1482, %v1481
        %v1497 = vpack.c.b16 %v1484, %v1483
        %v1498 = vpack.c.b16 %v1486, %v1485
        %v1499 = vpack.c.b16 %v1488, %v1487
        %v1500 = vpack.c.b16 %v1490, %v1489
        %v1501 = vpack.c.b16 %v1492, %v1491
        %v1502 = vpack.c.b16 %v1494, %v1493
        %1511 = vmatprep.subr.bf16.mxu0 0
        %1512 = vmatpush1.bf16.msra.mxu0 %v1495
        %1513 = vmatprep.subr.bf16.mxu0 0
        %1514 = vmatpush1.bf16.msra.mxu0 %v1496
        %1515 = vmatprep.subr.bf16.mxu0 0
        %1516 = vmatpush1.bf16.msra.mxu0 %v1497
        %1517 = vmatprep.subr.bf16.mxu0 0
        %1518 = vmatpush1.bf16.msra.mxu0 %v1498
        %1519 = vmatprep.subr.bf16.mxu0 0
        %1520 = vmatpush1.bf16.msra.mxu0 %v1499
        %1521 = vmatprep.subr.bf16.mxu0 0
        %1522 = vmatpush1.bf16.msra.mxu0 %v1500
        %1523 = vmatprep.subr.bf16.mxu0 0
        %1524 = vmatpush1.bf16.msra.mxu0 %v1501
        %1525 = vmatprep.subr.bf16.mxu0 0
        %1526 = vmatpush1.bf16.msra.mxu0 %v1502
        %1527 = vmatprep.subr.bf16.mxu0 0
        %1528 = vmatpush1.bf16.msra.mxu0 0
        %1529 = vmatprep.subr.bf16.mxu0 0
        %1530 = vmatpush1.bf16.msra.mxu0 0
        %1531 = vmatprep.subr.bf16.mxu0 0
        %1532 = vmatpush1.bf16.msra.mxu0 0
        %1533 = vmatprep.subr.bf16.mxu0 0
        %1534 = vmatpush1.bf16.msra.mxu0 0
        %1535 = vmatprep.subr.bf16.mxu0 0
        %1536 = vmatpush1.bf16.msra.mxu0 0
        %1537 = vmatprep.subr.bf16.mxu0 0
        %1538 = vmatpush1.bf16.msra.mxu0 0
        %1539 = vmatprep.subr.bf16.mxu0 0
        %1540 = vmatpush1.bf16.msra.mxu0 0
        %1541 = vmatprep.subr.bf16.mxu0 0
        %1542 = vmatpush1.bf16.msra.mxu0 0
        %1543 = vmatprep.mubr.bf16.mxu0 0
        %1544 = vmatmul.mubr.bf16.gmra.mrb[0].mxu0 %v1446
        %v1545 = vpop.f32.mrb[0].mxu0
        %v1546 = vadd.f32 0.0, %v1545
        %v1547 = vpop.f32.mrb[0].mxu0
        %v1548 = vpop.f32.mrb[0].mxu0
        %v1549 = vpop.f32.mrb[0].mxu0
        %1550 = vdwg.mxu0
        %v1551 = vadd.f32 %v1434, %v1546
        %v1552 = vld [vmem:[%s552] sm:$0x1]
        %v1554 = vlaneseq
        %v1555 = vshrl.u32 %v1554, 7
        %v1556 = vsub.s32 0, %v1555
        %v1557 = vrot.slane %v1552, %v1556
        %v1559 = vadd.f32 %v1551, %v1557
        %1560 = vadd.xlane.f32.xlu0 %v1559
        %v1561 = vpop.xlane.xlu0 %1560
        %v1562 = vmul.f32 %v1561, %v580
        %v1563 = vsub.f32 %v1559, %v1562
        %v1564 = vmul.f32 %v1563, %v1563
        %1565 = vadd.xlane.f32.xlu0 %v1564
        %v1566 = vpop.xlane.xlu0 %1565
        %v1567 = vmul.f32 %v1566, %v580
        %v1568 = vadd.f32 %v1567, 1e-05
        %v1569 = vrsqrt.pop %v1568
        %v1570 = vmul.f32 %v1563, %v1569
        %v1571 = vpack.c.bf16 %v1570, %v1570
        %v1572 = vld [vmem:[%s557] sm:$0xff]
        %v1573 = vld [vmem:[%s557 + $0x8] sm:$0xff]
        %v1574 = vld [vmem:[%s557 + $0x10] sm:$0xff]
        %v1575 = vld [vmem:[%s557 + $0x18] sm:$0xff]
        %v1576 = vld [vmem:[%s557 + $0x20] sm:$0xff]
        %v1577 = vld [vmem:[%s557 + $0x28] sm:$0xff]
        %v1578 = vld [vmem:[%s557 + $0x30] sm:$0xff]
        %v1579 = vld [vmem:[%s557 + $0x38] sm:$0xff]
        %v1580 = vld [vmem:[%s557 + $0x40] sm:$0xff]
        %v1581 = vld [vmem:[%s557 + $0x48] sm:$0xff]
        %v1582 = vld [vmem:[%s557 + $0x50] sm:$0xff]
        %v1583 = vld [vmem:[%s557 + $0x58] sm:$0xff]
        %v1584 = vld [vmem:[%s557 + $0x60] sm:$0xff]
        %v1585 = vld [vmem:[%s557 + $0x68] sm:$0xff]
        %v1586 = vld [vmem:[%s557 + $0x70] sm:$0xff]
        %v1587 = vld [vmem:[%s557 + $0x78] sm:$0xff]
        %v1588 = vld [vmem:[%s561] sm:$0x3]
        %v1590 = vlaneseq
        %v1591 = vshrl.u32 %v1590, 7
        %v1592 = vsub.s32 0, %v1591
        %v1593 = vrot.slane %v1588, %v1592
        %v1594 = vlaneseq
        %v1595 = vshrl.u32 %v1594, 7
        %v1596 = vsub.s32 1, %v1595
        %v1597 = vrot.slane %v1588, %v1596
        %v1616 = vunpack.c.l.b16 %v1572
        %v1617 = vunpack.c.h.b16 %v1572
        %v1618 = vunpack.c.l.b16 %v1573
        %v1619 = vunpack.c.h.b16 %v1573
        %v1620 = vunpack.c.l.b16 %v1574
        %v1621 = vunpack.c.h.b16 %v1574
        %v1622 = vunpack.c.l.b16 %v1575
        %v1623 = vunpack.c.h.b16 %v1575
        %v1624 = vunpack.c.l.b16 %v1576
        %v1625 = vunpack.c.h.b16 %v1576
        %v1626 = vunpack.c.l.b16 %v1577
        %v1627 = vunpack.c.h.b16 %v1577
        %v1628 = vunpack.c.l.b16 %v1578
        %v1629 = vunpack.c.h.b16 %v1578
        %v1630 = vunpack.c.l.b16 %v1579
        %v1631 = vunpack.c.h.b16 %v1579
        %v1632 = vunpack.c.l.b16 %v1580
        %v1633 = vunpack.c.h.b16 %v1580
        %v1634 = vunpack.c.l.b16 %v1581
        %v1635 = vunpack.c.h.b16 %v1581
        %v1636 = vunpack.c.l.b16 %v1582
        %v1637 = vunpack.c.h.b16 %v1582
        %v1638 = vunpack.c.l.b16 %v1583
        %v1639 = vunpack.c.h.b16 %v1583
        %v1640 = vunpack.c.l.b16 %v1584
        %v1641 = vunpack.c.h.b16 %v1584
        %v1642 = vunpack.c.l.b16 %v1585
        %v1643 = vunpack.c.h.b16 %v1585
        %v1644 = vunpack.c.l.b16 %v1586
        %v1645 = vunpack.c.h.b16 %v1586
        %v1646 = vunpack.c.l.b16 %v1587
        %v1647 = vunpack.c.h.b16 %v1587
        %v1648 = vpack.c.b16 %v1618, %v1616
        %v1649 = vpack.c.b16 %v1619, %v1617
        %v1650 = vpack.c.b16 %v1622, %v1620
        %v1651 = vpack.c.b16 %v1623, %v1621
        %v1652 = vpack.c.b16 %v1626, %v1624
        %v1653 = vpack.c.b16 %v1627, %v1625
        %v1654 = vpack.c.b16 %v1630, %v1628
        %v1655 = vpack.c.b16 %v1631, %v1629
        %v1656 = vpack.c.b16 %v1634, %v1632
        %v1657 = vpack.c.b16 %v1635, %v1633
        %v1658 = vpack.c.b16 %v1638, %v1636
        %v1659 = vpack.c.b16 %v1639, %v1637
        %v1660 = vpack.c.b16 %v1642, %v1640
        %v1661 = vpack.c.b16 %v1643, %v1641
        %v1662 = vpack.c.b16 %v1646, %v1644
        %v1663 = vpack.c.b16 %v1647, %v1645
        %1680 = vmatprep.subr.bf16.mxu0 %v1649
        %1681 = vmatpush1.bf16.msra.mxu0 %v1648
        %1682 = vmatprep.subr.bf16.mxu0 %v1651
        %1683 = vmatpush1.bf16.msra.mxu0 %v1650
        %1684 = vmatprep.subr.bf16.mxu0 %v1653
        %1685 = vmatpush1.bf16.msra.mxu0 %v1652
        %1686 = vmatprep.subr.bf16.mxu0 %v1655
        %1687 = vmatpush1.bf16.msra.mxu0 %v1654
        %1688 = vmatprep.subr.bf16.mxu0 %v1657
        %1689 = vmatpush1.bf16.msra.mxu0 %v1656
        %1690 = vmatprep.subr.bf16.mxu0 %v1659
        %1691 = vmatpush1.bf16.msra.mxu0 %v1658
        %1692 = vmatprep.subr.bf16.mxu0 %v1661
        %1693 = vmatpush1.bf16.msra.mxu0 %v1660
        %1694 = vmatprep.subr.bf16.mxu0 %v1663
        %1695 = vmatpush1.bf16.msra.mxu0 %v1662
        %1696 = vmatprep.subr.bf16.mxu0 0
        %1697 = vmatpush1.bf16.msra.mxu0 0
        %1698 = vmatprep.subr.bf16.mxu0 0
        %1699 = vmatpush1.bf16.msra.mxu0 0
        %1700 = vmatprep.subr.bf16.mxu0 0
        %1701 = vmatpush1.bf16.msra.mxu0 0
        %1702 = vmatprep.subr.bf16.mxu0 0
        %1703 = vmatpush1.bf16.msra.mxu0 0
        %1704 = vmatprep.subr.bf16.mxu0 0
        %1705 = vmatpush1.bf16.msra.mxu0 0
        %1706 = vmatprep.subr.bf16.mxu0 0
        %1707 = vmatpush1.bf16.msra.mxu0 0
        %1708 = vmatprep.subr.bf16.mxu0 0
        %1709 = vmatpush1.bf16.msra.mxu0 0
        %1710 = vmatprep.subr.bf16.mxu0 0
        %1711 = vmatpush1.bf16.msra.mxu0 0
        %1712 = vmatprep.mubr.bf16.mxu0 0
        %1713 = vmatmul.mubr.bf16.gmra.mrb[0].mxu0 %v1571
        %v1714 = vpop.f32.mrb[0].mxu0
        %v1715 = vadd.f32 %v1593, %v1714
        %v1716 = vpop.f32.mrb[0].mxu0
        %v1717 = vadd.f32 %v1597, %v1716
        %v1718 = vpop.f32.mrb[0].mxu0
        %v1719 = vpop.f32.mrb[0].mxu0
        %1720 = vdwg.mxu0
        %v1721 = vmul.f32 %v1715, 0.5
        %v1722 = vmul.f32 %v1717, 0.5
        %v1723 = vmul.f32 %v1715, 0.044715
        %v1724 = vmul.f32 %v1717, 0.044715
        %v1725 = vmul.f32 %v1723, %v1715
        %v1726 = vmul.f32 %v1724, %v1717
        %v1727 = vmul.f32 %v1725, %v1715
        %v1728 = vmul.f32 %v1726, %v1717
        %v1729 = vadd.f32 %v1715, %v1727
        %v1730 = vadd.f32 %v1717, %v1728
        %v1731 = vmul.f32 %v1729, 0.7978846
        %v1732 = vmul.f32 %v1730, 0.7978846
        %v1733 = vtanh.pop %v1731
        %v1734 = vtanh.pop %v1732
        %v1735 = vadd.f32 %v1733, 1.0
        %v1736 = vadd.f32 %v1734, 1.0
        %v1737 = vmul.f32 %v1721, %v1735
        %v1738 = vmul.f32 %v1722, %v1736
        %v1739 = vpack.c.bf16 %v1737, %v1737
        %v1740 = vpack.c.bf16 %v1738, %v1738
        %v1741 = vld [vmem:[%s566] sm:$0xf]
        %v1742 = vld [vmem:[%s566 + $0x4] sm:$0xf]
        %v1743 = vld [vmem:[%s566 + $0x8] sm:$0xf]
        %v1744 = vld [vmem:[%s566 + $0xc] sm:$0xf]
        %v1745 = vld [vmem:[%s566 + $0x10] sm:$0xf]
        %v1746 = vld [vmem:[%s566 + $0x14] sm:$0xf]
        %v1747 = vld [vmem:[%s566 + $0x18] sm:$0xf]
        %v1748 = vld [vmem:[%s566 + $0x1c] sm:$0xf]
        %v1749 = vld [vmem:[%s566 + $0x20] sm:$0xf]
        %v1750 = vld [vmem:[%s566 + $0x24] sm:$0xf]
        %v1751 = vld [vmem:[%s566 + $0x28] sm:$0xf]
        %v1752 = vld [vmem:[%s566 + $0x2c] sm:$0xf]
        %v1753 = vld [vmem:[%s566 + $0x30] sm:$0xf]
        %v1754 = vld [vmem:[%s566 + $0x34] sm:$0xf]
        %v1755 = vld [vmem:[%s566 + $0x38] sm:$0xf]
        %v1756 = vld [vmem:[%s566 + $0x3c] sm:$0xf]
        %v1757 = vld [vmem:[%s566 + $0x40] sm:$0xf]
        %v1758 = vld [vmem:[%s566 + $0x44] sm:$0xf]
        %v1759 = vld [vmem:[%s566 + $0x48] sm:$0xf]
        %v1760 = vld [vmem:[%s566 + $0x4c] sm:$0xf]
        %v1761 = vld [vmem:[%s566 + $0x50] sm:$0xf]
        %v1762 = vld [vmem:[%s566 + $0x54] sm:$0xf]
        %v1763 = vld [vmem:[%s566 + $0x58] sm:$0xf]
        %v1764 = vld [vmem:[%s566 + $0x5c] sm:$0xf]
        %v1765 = vld [vmem:[%s566 + $0x60] sm:$0xf]
        %v1766 = vld [vmem:[%s566 + $0x64] sm:$0xf]
        %v1767 = vld [vmem:[%s566 + $0x68] sm:$0xf]
        %v1768 = vld [vmem:[%s566 + $0x6c] sm:$0xf]
        %v1769 = vld [vmem:[%s566 + $0x70] sm:$0xf]
        %v1770 = vld [vmem:[%s566 + $0x74] sm:$0xf]
        %v1771 = vld [vmem:[%s566 + $0x78] sm:$0xf]
        %v1772 = vld [vmem:[%s566 + $0x7c] sm:$0xf]
        %v1805 = vunpack.c.l.b16 %v1741
        %v1806 = vunpack.c.l.b16 %v1742
        %v1807 = vunpack.c.l.b16 %v1743
        %v1808 = vunpack.c.l.b16 %v1744
        %v1809 = vunpack.c.l.b16 %v1745
        %v1810 = vunpack.c.l.b16 %v1746
        %v1811 = vunpack.c.l.b16 %v1747
        %v1812 = vunpack.c.l.b16 %v1748
        %v1813 = vunpack.c.l.b16 %v1749
        %v1814 = vunpack.c.l.b16 %v1750
        %v1815 = vunpack.c.l.b16 %v1751
        %v1816 = vunpack.c.l.b16 %v1752
        %v1817 = vunpack.c.l.b16 %v1753
        %v1818 = vunpack.c.l.b16 %v1754
        %v1819 = vunpack.c.l.b16 %v1755
        %v1820 = vunpack.c.l.b16 %v1756
        %v1821 = vunpack.c.l.b16 %v1757
        %v1822 = vunpack.c.l.b16 %v1758
        %v1823 = vunpack.c.l.b16 %v1759
        %v1824 = vunpack.c.l.b16 %v1760
        %v1825 = vunpack.c.l.b16 %v1761
        %v1826 = vunpack.c.l.b16 %v1762
        %v1827 = vunpack.c.l.b16 %v1763
        %v1828 = vunpack.c.l.b16 %v1764
        %v1829 = vunpack.c.l.b16 %v1765
        %v1830 = vunpack.c.l.b16 %v1766
        %v1831 = vunpack.c.l.b16 %v1767
        %v1832 = vunpack.c.l.b16 %v1768
        %v1833 = vunpack.c.l.b16 %v1769
        %v1834 = vunpack.c.l.b16 %v1770
        %v1835 = vunpack.c.l.b16 %v1771
        %v1836 = vunpack.c.l.b16 %v1772
        %v1837 = vpack.c.b16 %v1806, %v1805
        %v1838 = vpack.c.b16 %v1808, %v1807
        %v1839 = vpack.c.b16 %v1810, %v1809
        %v1840 = vpack.c.b16 %v1812, %v1811
        %v1841 = vpack.c.b16 %v1814, %v1813
        %v1842 = vpack.c.b16 %v1816, %v1815
        %v1843 = vpack.c.b16 %v1818, %v1817
        %v1844 = vpack.c.b16 %v1820, %v1819
        %v1845 = vpack.c.b16 %v1822, %v1821
        %v1846 = vpack.c.b16 %v1824, %v1823
        %v1847 = vpack.c.b16 %v1826, %v1825
        %v1848 = vpack.c.b16 %v1828, %v1827
        %v1849 = vpack.c.b16 %v1830, %v1829
        %v1850 = vpack.c.b16 %v1832, %v1831
        %v1851 = vpack.c.b16 %v1834, %v1833
        %v1852 = vpack.c.b16 %v1836, %v1835
        %1869 = vmatprep.subr.bf16.mxu0 0
        %1870 = vmatpush1.bf16.msra.mxu0 %v1837
        %1871 = vmatprep.subr.bf16.mxu0 0
        %1872 = vmatpush1.bf16.msra.mxu0 %v1838
        %1873 = vmatprep.subr.bf16.mxu0 0
        %1874 = vmatpush1.bf16.msra.mxu0 %v1839
        %1875 = vmatprep.subr.bf16.mxu0 0
        %1876 = vmatpush1.bf16.msra.mxu0 %v1840
        %1877 = vmatprep.subr.bf16.mxu0 0
        %1878 = vmatpush1.bf16.msra.mxu0 %v1841
        %1879 = vmatprep.subr.bf16.mxu0 0
        %1880 = vmatpush1.bf16.msra.mxu0 %v1842
        %1881 = vmatprep.subr.bf16.mxu0 0
        %1882 = vmatpush1.bf16.msra.mxu0 %v1843
        %1883 = vmatprep.subr.bf16.mxu0 0
        %1884 = vmatpush1.bf16.msra.mxu0 %v1844
        %1885 = vmatprep.subr.bf16.mxu0 0
        %1886 = vmatpush1.bf16.msra.mxu0 %v1845
        %1887 = vmatprep.subr.bf16.mxu0 0
        %1888 = vmatpush1.bf16.msra.mxu0 %v1846
        %1889 = vmatprep.subr.bf16.mxu0 0
        %1890 = vmatpush1.bf16.msra.mxu0 %v1847
        %1891 = vmatprep.subr.bf16.mxu0 0
        %1892 = vmatpush1.bf16.msra.mxu0 %v1848
        %1893 = vmatprep.subr.bf16.mxu0 0
        %1894 = vmatpush1.bf16.msra.mxu0 %v1849
        %1895 = vmatprep.subr.bf16.mxu0 0
        %1896 = vmatpush1.bf16.msra.mxu0 %v1850
        %1897 = vmatprep.subr.bf16.mxu0 0
        %1898 = vmatpush1.bf16.msra.mxu0 %v1851
        %1899 = vmatprep.subr.bf16.mxu0 0
        %1900 = vmatpush1.bf16.msra.mxu0 %v1852
        %1901 = vmatprep.mubr.bf16.mxu0 %v1740
        %1902 = vmatmul.mubr.bf16.gmra.mrb[0].mxu0 %v1739
        %v1903 = vpop.f32.mrb[0].mxu0
        %v1904 = vadd.f32 0.0, %v1903
        %v1905 = vpop.f32.mrb[0].mxu0
        %v1906 = vpop.f32.mrb[0].mxu0
        %v1907 = vpop.f32.mrb[0].mxu0
        %1908 = vdwg.mxu0
        %v1909 = vadd.f32 %v1559, %v1904
        %v1910 = vld [vmem:[%s569] sm:$0x1]
        %v1912 = vlaneseq
        %v1913 = vshrl.u32 %v1912, 7
        %v1914 = vsub.s32 0, %v1913
        %v1915 = vrot.slane %v1910, %v1914
        %v1917 = vadd.f32 %v1909, %v1915
        %1918 = vst [vmem:[%s523] sm:$0xff] %v1917
        %s1919 = sand.u32 %s331, 1
        %s1920 = scalar_lea.sflag [#allocation3], %s1919
        %s1921 = sand.u32 %s331, 1
        %s1922 = smul.addr %s1921, 8
        %s1923 = scalar_lea.vmem [#allocation2], %s1922
        // Predicated region
        $region69: #{fsa_transformer_encoder.1} parent=63 // pred_check
          %p1924 = pneg %p341
        $region70: #{fsa_transformer_encoder.1} parent=63 // pred_check_branch
          %1926 = sbr.rel (%p1924) target = $region72
        $region71: #{fsa_transformer_encoder.1} parent=63 // pred_region
          %s1928 = ssub.s32 128, 128
          %1929 = vsyncadd %s1920, %s1928
          %s1930 = smul.addr %s29, 128
          %s1931 = scalar_lea.hbm %s11, %s1930
          %s1933 = sshll.u32 %s1923, 4
          %s1934 = int_to_ptr.vmem [resolvable:$true] %s1933
          %1936 = dma.vmem_to_hbm [thread:$0]  %s1934, 128, %s1931, %s1920
        $region72: #{fsa_transformer_encoder.1} parent=63 // pred_fallthru
          _
      $region64: #{fsa_transformer_encoder.1} parent=5 // pred_fallthru
        _
      %p1937 = scmp.le.s32.totalorder 2, %s20
      // Predicated region
      $region73: #{fsa_transformer_encoder.1} parent=5 // pred_check
        %p1938 = pneg %p1937
      $region74: #{fsa_transformer_encoder.1} parent=5 // pred_check_branch
        %1940 = sbr.rel (%p1938) target = $region76
      $region75: #{fsa_transformer_encoder.1} parent=5 // pred_region
        %s1941 = ssub.s32 %s20, 2
        // Predicated region
        $region77: #{fsa_transformer_encoder.1} parent=75 // pred_check
          %p1942 = pneg %p347
        $region78: #{fsa_transformer_encoder.1} parent=75 // pred_check_branch
          %1944 = sbr.rel (%p1942) target = $region80
        $region79: #{fsa_transformer_encoder.1} parent=75 // pred_region
          %s1945 = sand.u32 %s332, 1
          %s1946 = scalar_lea.sflag [#allocation3], %s1945
          %s1947 = sand.u32 %s332, 1
          %s1948 = smul.addr %s1947, 8
          %s1949 = scalar_lea.vmem [#allocation2], %s1948
          %1950 = dma.done %s1946, 128
        $region80: #{fsa_transformer_encoder.1} parent=75 // pred_fallthru
          _
      $region76: #{fsa_transformer_encoder.1} parent=5 // pred_fallthru
        _
    $region6: #{fsa_transformer_encoder.1} parent=1 // loop_footer
      %s24 = sadd.s32 1, %s20
    $region7: #{fsa_transformer_encoder.1} parent=1 // loop_footer_branch
      %19 = sbr.rel target = $region3
    $region8: #{fsa_transformer_encoder.1} parent=1 // loop_exit
      _
    %1951 = vsyncpa [#allocation3], 1
    %s1952 = scalar_lea.sflag [#allocation3], 1
    %1953 = vsyncpa %s1952, 1

</llo_original>
